<compile_context>
chip_gen: v7x
topology: tpu7x:2x2x1
jax: 0.10.0
libtpu: 0.0.40
codegen_flags: <defaults>
</compile_context>

<pallas_src>
import functools

import jax
import jax.numpy as jnp
from jax.experimental import pallas as pl
from jax.experimental.pallas import tpu as pltpu


def _round_up(x, m):
    return (x + m - 1) // m * m


def _actor_critic_kernel(
    state_ref, action_ref,
    w1_ref, b1_ref, w2_ref, b2_ref, w3_ref, b3_ref,
    out_ref, *, action_dim,
):
    # ---- fused actor+critic MLP (bf16 MXU inputs, f32 accumulation) ----
    x = state_ref[...]                                            # (Bt, S) bf16
    h1 = jnp.tanh(
        jnp.dot(x, w1_ref[...], preferred_element_type=jnp.float32)
        + b1_ref[...])                                            # (Bt, 128) f32
    h2 = jnp.tanh(
        jnp.dot(h1.astype(jnp.bfloat16), w2_ref[...],
                preferred_element_type=jnp.float32)
        + b2_ref[...])                                            # (Bt, 128) f32
    out3 = (jnp.dot(h2.astype(jnp.bfloat16), w3_ref[...],
                    preferred_element_type=jnp.float32)
            + b3_ref[...])                                        # (Bt, 128) f32

    # Lanes 0..A-1 are actor logits, lane A is the critic value, rest are pad.
    col = jax.lax.broadcasted_iota(jnp.int32, out3.shape, 1)      # (Bt, 128)
    neg_big = jnp.float32(-1e30)                                  # finite: avoids 0*inf=NaN
    logits = jnp.where(col < action_dim, out3, neg_big)

    # numerically stable softmax / log-softmax over the valid logit lanes
    m = jnp.max(logits, axis=-1, keepdims=True)
    z = logits - m
    e = jnp.exp(z)
    denom = jnp.sum(e, axis=-1, keepdims=True)
    log_probs = z - jnp.log(denom)                                # pad lanes ~ -1e30
    probs = e * pl.reciprocal(denom, approx=True)                 # pad lanes exactly 0

    # gather log_prob at the chosen action via one-hot (iota compare)
    a = action_ref[...]                                           # (Bt, 1) int32
    onehot = (col == a).astype(jnp.float32)
    logp = jnp.sum(log_probs * onehot, axis=-1, keepdims=True)    # (Bt, 1)
    ent = -jnp.sum(probs * log_probs, axis=-1, keepdims=True)     # (Bt, 1)

    # critic value sits in lane `action_dim`
    val = jnp.sum(jnp.where(col == action_dim, out3, 0.0),
                  axis=-1, keepdims=True)                         # (Bt, 1)

    # lane-dense packed store: col 0 = logp, col 1 = entropy, col 2 = value
    out_ref[...] = jnp.where(col == 0, logp,
                   jnp.where(col == 1, ent,
                   jnp.where(col == 2, val, 0.0)))


def pack_params(p, state_dim, action_dim, n_latent_var):
    """Fuse actor+critic weights into block-diagonal, lane-padded matrices."""
    H = n_latent_var
    HID = _round_up(2 * H, 128)
    OUT = _round_up(action_dim + 1, 128)

    w1 = jnp.zeros((state_dim, HID), jnp.float32)
    w1 = w1.at[:, :H].set(p["aw1"]).at[:, H:2 * H].set(p["vw1"])
    b1 = jnp.zeros((1, HID), jnp.float32)
    b1 = b1.at[:, :H].set(p["ab1"]).at[:, H:2 * H].set(p["vb1"])

    w2 = jnp.zeros((HID, HID), jnp.float32)
    w2 = w2.at[:H, :H].set(p["aw2"]).at[H:2 * H, H:2 * H].set(p["vw2"])
    b2 = jnp.zeros((1, HID), jnp.float32)
    b2 = b2.at[:, :H].set(p["ab2"]).at[:, H:2 * H].set(p["vb2"])

    w3 = jnp.zeros((HID, OUT), jnp.float32)
    w3 = w3.at[:H, :action_dim].set(p["aw3"])
    w3 = w3.at[H:2 * H, action_dim:action_dim + 1].set(p["vw3"])
    b3 = jnp.zeros((1, OUT), jnp.float32)
    b3 = b3.at[:, :action_dim].set(p["ab3"])
    b3 = b3.at[:, action_dim:action_dim + 1].set(p["vb3"])

    # bf16 weights halve HBM/VMEM bytes and hit the MXU bf16 path on v6e/v7x;
    # biases stay f32 (added to the f32 accumulator).
    return dict(
        w1=w1.astype(jnp.bfloat16), b1=b1,
        w2=w2.astype(jnp.bfloat16), b2=b2,
        w3=w3.astype(jnp.bfloat16), b3=b3,
    )


def actor_critic_evaluate(state, action, packed, *, action_dim, block_b=512):
    """Pallas equivalent of ActorCritic.evaluate(state, action).

    state : (B, state_dim) f32, action: (B,) int, packed: output of pack_params.
    Returns (action_logprobs (B,), state_value (B,), dist_entropy (B,)).
    """
    B, state_dim = state.shape
    HID = packed["w1"].shape[1]
    OUT = packed["w3"].shape[1]

    # batch tile: multiple of 8 sublanes, pad batch to a multiple of the tile
    bt = min(block_b, _round_up(B, 8))
    Bp = _round_up(B, bt)
    state = state.astype(jnp.bfloat16)          # halve HBM traffic for the state tile
    action2d = action.astype(jnp.int32).reshape(B, 1)
    if Bp != B:
        state = jnp.pad(state, ((0, Bp - B), (0, 0)))
        action2d = jnp.pad(action2d, ((0, Bp - B), (0, 0)))

    const = lambda i: (0, 0)                    # weights stay VMEM-resident

    kernel = functools.partial(_actor_critic_kernel, action_dim=action_dim)
    packed_out = pl.pallas_call(
        kernel,
        out_shape=jax.ShapeDtypeStruct((Bp, OUT), jnp.float32),
        grid_spec=pltpu.PrefetchScalarGridSpec(
            num_scalar_prefetch=0,
            grid=(Bp // bt,),
            in_specs=[
                pl.BlockSpec((bt, state_dim), lambda i: (i, 0)),
                pl.BlockSpec((bt, 1), lambda i: (i, 0)),
                pl.BlockSpec((state_dim, HID), const),
                pl.BlockSpec((1, HID), const),
                pl.BlockSpec((HID, HID), const),
                pl.BlockSpec((1, HID), const),
                pl.BlockSpec((HID, OUT), const),
                pl.BlockSpec((1, OUT), const),
            ],
            out_specs=pl.BlockSpec((bt, OUT), lambda i: (i, 0)),
        ),
        compiler_params=pltpu.CompilerParams(
            dimension_semantics=("parallel",),   # megacore sharding on v7x
            vmem_limit_bytes=48 << 20,           # safe on v7x's 64 MiB VMEM
        ),
    )(state, action2d,
      packed["w1"], packed["b1"], packed["w2"], packed["b2"],
      packed["w3"], packed["b3"])

    logp = packed_out[:B, 0]
    ent = packed_out[:B, 1]
    val = packed_out[:B, 2]
    # torch.squeeze(state_value) semantics
    return logp, jnp.squeeze(val), ent


def init_params(key, state_dim, action_dim, n_latent_var):
    """Deterministic init mimicking nn.Linear default (U(-1/sqrt(fan_in), +))."""
    def linear(k, fan_in, fan_out):
        kw, kb = jax.random.split(k)
        bound = 1.0 / jnp.sqrt(jnp.float32(fan_in))
        w = jax.random.uniform(kw, (fan_in, fan_out), jnp.float32, -bound, bound)
        b = jax.random.uniform(kb, (1, fan_out), jnp.float32, -bound, bound)
        return w, b

    keys = jax.random.split(key, 6)
    aw1, ab1 = linear(keys[0], state_dim, n_latent_var)
    aw2, ab2 = linear(keys[1], n_latent_var, n_latent_var)
    aw3, ab3 = linear(keys[2], n_latent_var, action_dim)
    vw1, vb1 = linear(keys[3], state_dim, n_latent_var)
    vw2, vb2 = linear(keys[4], n_latent_var, n_latent_var)
    vw3, vb3 = linear(keys[5], n_latent_var, 1)
    return dict(aw1=aw1, ab1=ab1, aw2=aw2, ab2=ab2, aw3=aw3, ab3=ab3,
                vw1=vw1, vb1=vb1, vw2=vw2, vb2=vb2, vw3=vw3, vb3=vb3)


def _reference_evaluate(state, action, p, matmul_dtype=jnp.bfloat16):
    """Pure-JAX reference (same bf16-input / f32-accumulate matmul numerics)."""
    def dot(a, b):
        return jnp.dot(a.astype(matmul_dtype), b.astype(matmul_dtype),
                       preferred_element_type=jnp.float32)
    h = jnp.tanh(dot(state, p["aw1"]) + p["ab1"])
    h = jnp.tanh(dot(h, p["aw2"]) + p["ab2"])
    logits = dot(h, p["aw3"]) + p["ab3"]
    log_probs = jax.nn.log_softmax(logits, axis=-1)
    probs = jnp.exp(log_probs)
    logp = jnp.take_along_axis(log_probs, action[:, None], axis=-1)[:, 0]
    ent = -jnp.sum(probs * log_probs, axis=-1)
    hv = jnp.tanh(dot(state, p["vw1"]) + p["vb1"])
    hv = jnp.tanh(dot(hv, p["vw2"]) + p["vb2"])
    val = jnp.squeeze(dot(hv, p["vw3"]) + p["vb3"])
    return logp, val, ent


if __name__ == "__main__":
    STATE_DIM, ACTION_DIM, HIDDEN = 16, 8, 32
    B = 200  # deliberately not a multiple of the 128-row batch tile

    key = jax.random.PRNGKey(0)
    k_state, k_action, k_params = jax.random.split(key, 3)

    state = jax.random.normal(k_state, (B, STATE_DIM), jnp.float32)
    action = jax.random.randint(k_action, (B,), 0, ACTION_DIM, jnp.int32)
    params = init_params(k_params, STATE_DIM, ACTION_DIM, HIDDEN)
    packed = pack_params(params, STATE_DIM, ACTION_DIM, HIDDEN)

    fn = jax.jit(functools.partial(actor_critic_evaluate,
                                   action_dim=ACTION_DIM, block_b=128))
    logp, val, ent = fn(state, action, packed)
    jax.block_until_ready((logp, val, ent))

    ref_logp, ref_val, ref_ent = _reference_evaluate(state, action, params)
    assert logp.shape == (B,) and val.shape == (B,) and ent.shape == (B,)
    # tolerance covers bf16 matmul inputs + approx reciprocal in the kernel
    assert jnp.allclose(logp, ref_logp, atol=1e-2), "logprob mismatch"
    assert jnp.allclose(val, ref_val, atol=1e-2), "value mismatch"
    assert jnp.allclose(ent, ref_ent, atol=1e-2), "entropy mismatch"

    print("KERNEL_OK")
</pallas_src>

<mosaic_0001>
module attributes {stable_mosaic.version = 11 : i64} {
  func.func @_actor_critic_kernel(%arg0: i32, %arg1: memref<128x16xbf16, #tpu.memory_space<vmem>>, %arg2: memref<128x1xi32, #tpu.memory_space<vmem>>, %arg3: memref<16x128xbf16, #tpu.memory_space<vmem>>, %arg4: memref<1x128xf32, #tpu.memory_space<vmem>>, %arg5: memref<128x128xbf16, #tpu.memory_space<vmem>>, %arg6: memref<1x128xf32, #tpu.memory_space<vmem>>, %arg7: memref<128x128xbf16, #tpu.memory_space<vmem>>, %arg8: memref<1x128xf32, #tpu.memory_space<vmem>>, %arg9: memref<128x128xf32, #tpu.memory_space<vmem>>) attributes {dimension_semantics = [#tpu.dimension_semantics<parallel>], iteration_bounds = array<i64: 2>, scalar_prefetch = 0 : i64, scratch_operands = 0 : i64, tpu.core_type = #tpu.core_type<tc>, window_params = [{transform_indices = @transform_0, window_bounds = array<i64: 128, 16>}, {transform_indices = @transform_1, window_bounds = array<i64: 128, 1>}, {pipeline_mode = #tpu.pipeline_mode<synchronous>, transform_indices = @transform_2, window_bounds = array<i64: 16, 128>}, {pipeline_mode = #tpu.pipeline_mode<synchronous>, transform_indices = @transform_3, window_bounds = array<i64: 1, 128>}, {pipeline_mode = #tpu.pipeline_mode<synchronous>, transform_indices = @transform_4, window_bounds = array<i64: 128, 128>}, {pipeline_mode = #tpu.pipeline_mode<synchronous>, transform_indices = @transform_5, window_bounds = array<i64: 1, 128>}, {pipeline_mode = #tpu.pipeline_mode<synchronous>, transform_indices = @transform_6, window_bounds = array<i64: 128, 128>}, {pipeline_mode = #tpu.pipeline_mode<synchronous>, transform_indices = @transform_7, window_bounds = array<i64: 1, 128>}, {transform_indices = @transform_8, window_bounds = array<i64: 128, 128>}]} {
    %c0 = arith.constant 0 : index
    %c0_0 = arith.constant 0 : index
    %0 = vector.load %arg1[%c0, %c0_0] : memref<128x16xbf16, #tpu.memory_space<vmem>>, vector<128x16xbf16>
    %c0_1 = arith.constant 0 : index
    %c0_2 = arith.constant 0 : index
    %1 = vector.load %arg3[%c0_1, %c0_2] : memref<16x128xbf16, #tpu.memory_space<vmem>>, vector<16x128xbf16>
    %cst = arith.constant dense<0.000000e+00> : vector<128x128xf32>
    %2 = tpu.matmul %0, %1, %cst {dimension_numbers = #tpu.dot_dimension_numbers<[1], [0], [0], [1], [0, 0, 1, 1], [], []>} : vector<128x16xbf16>, vector<16x128xbf16>, vector<128x128xf32> -> vector<128x128xf32>
    %c0_3 = arith.constant 0 : index
    %c0_4 = arith.constant 0 : index
    %3 = vector.load %arg4[%c0_3, %c0_4] : memref<1x128xf32, #tpu.memory_space<vmem>>, vector<1x128xf32>
    %4 = vector.broadcast %3 : vector<1x128xf32> to vector<128x128xf32>
    %5 = arith.addf %2, %4 : vector<128x128xf32>
    %6 = math.tanh %5 : vector<128x128xf32>
    %7 = arith.truncf %6 : vector<128x128xf32> to vector<128x128xbf16>
    %c0_5 = arith.constant 0 : index
    %c0_6 = arith.constant 0 : index
    %8 = vector.load %arg5[%c0_5, %c0_6] : memref<128x128xbf16, #tpu.memory_space<vmem>>, vector<128x128xbf16>
    %cst_7 = arith.constant dense<0.000000e+00> : vector<128x128xf32>
    %9 = tpu.matmul %7, %8, %cst_7 {dimension_numbers = #tpu.dot_dimension_numbers<[1], [0], [0], [1], [0, 0, 1, 1], [], []>} : vector<128x128xbf16>, vector<128x128xbf16>, vector<128x128xf32> -> vector<128x128xf32>
    %c0_8 = arith.constant 0 : index
    %c0_9 = arith.constant 0 : index
    %10 = vector.load %arg6[%c0_8, %c0_9] : memref<1x128xf32, #tpu.memory_space<vmem>>, vector<1x128xf32>
    %11 = vector.broadcast %10 : vector<1x128xf32> to vector<128x128xf32>
    %12 = arith.addf %9, %11 : vector<128x128xf32>
    %13 = math.tanh %12 : vector<128x128xf32>
    %14 = arith.truncf %13 : vector<128x128xf32> to vector<128x128xbf16>
    %c0_10 = arith.constant 0 : index
    %c0_11 = arith.constant 0 : index
    %15 = vector.load %arg7[%c0_10, %c0_11] : memref<128x128xbf16, #tpu.memory_space<vmem>>, vector<128x128xbf16>
    %cst_12 = arith.constant dense<0.000000e+00> : vector<128x128xf32>
    %16 = tpu.matmul %14, %15, %cst_12 {dimension_numbers = #tpu.dot_dimension_numbers<[1], [0], [0], [1], [0, 0, 1, 1], [], []>} : vector<128x128xbf16>, vector<128x128xbf16>, vector<128x128xf32> -> vector<128x128xf32>
    %c0_13 = arith.constant 0 : index
    %c0_14 = arith.constant 0 : index
    %17 = vector.load %arg8[%c0_13, %c0_14] : memref<1x128xf32, #tpu.memory_space<vmem>>, vector<1x128xf32>
    %18 = vector.broadcast %17 : vector<1x128xf32> to vector<128x128xf32>
    %19 = arith.addf %16, %18 : vector<128x128xf32>
    %20 = tpu.iota {dimensions = array<i32: 1>} : vector<128x128xi32>
    %c8_i32 = arith.constant 8 : i32
    %21 = vector.broadcast %c8_i32 : i32 to vector<128x128xi32>
    %22 = arith.cmpi slt, %20, %21 : vector<128x128xi32>
    %cst_15 = arith.constant -1.000000e+30 : f32
    %23 = vector.broadcast %cst_15 : f32 to vector<128x128xf32>
    %24 = arith.select %22, %19, %23 : vector<128x128xi1>, vector<128x128xf32>
    %cst_16 = arith.constant dense<0xFF800000> : vector<128xf32>
    %25 = vector.multi_reduction <maximumf>, %24, %cst_16 [1] : vector<128x128xf32> to vector<128xf32>
    %26 = vector.shape_cast %25 : vector<128xf32> to vector<128x1xf32>
    %27 = vector.broadcast %26 : vector<128x1xf32> to vector<128x128xf32>
    %28 = arith.subf %24, %27 : vector<128x128xf32>
    %29 = math.exp %28 : vector<128x128xf32>
    %cst_17 = arith.constant dense<0.000000e+00> : vector<128xf32>
    %30 = vector.multi_reduction <add>, %29, %cst_17 [1] : vector<128x128xf32> to vector<128xf32>
    %31 = vector.shape_cast %30 : vector<128xf32> to vector<128x1xf32>
    %32 = math.log %31 : vector<128x1xf32>
    %33 = vector.broadcast %32 : vector<128x1xf32> to vector<128x128xf32>
    %34 = arith.subf %28, %33 : vector<128x128xf32>
    %35 = tpu.reciprocal %31 {approx = true} : vector<128x1xf32> -> vector<128x1xf32>
    %36 = vector.broadcast %35 : vector<128x1xf32> to vector<128x128xf32>
    %37 = arith.mulf %29, %36 : vector<128x128xf32>
    %c0_18 = arith.constant 0 : index
    %c0_19 = arith.constant 0 : index
    %38 = vector.load %arg2[%c0_18, %c0_19] : memref<128x1xi32, #tpu.memory_space<vmem>>, vector<128x1xi32>
    %39 = vector.broadcast %38 : vector<128x1xi32> to vector<128x128xi32>
    %40 = arith.cmpi eq, %20, %39 : vector<128x128xi32>
    %41 = arith.extui %40 : vector<128x128xi1> to vector<128x128xi32>
    %42 = arith.sitofp %41 : vector<128x128xi32> to vector<128x128xf32>
    %43 = arith.mulf %34, %42 : vector<128x128xf32>
    %cst_20 = arith.constant dense<0.000000e+00> : vector<128xf32>
    %44 = vector.multi_reduction <add>, %43, %cst_20 [1] : vector<128x128xf32> to vector<128xf32>
    %45 = vector.shape_cast %44 : vector<128xf32> to vector<128x1xf32>
    %46 = arith.mulf %37, %34 : vector<128x128xf32>
    %cst_21 = arith.constant dense<0.000000e+00> : vector<128xf32>
    %47 = vector.multi_reduction <add>, %46, %cst_21 [1] : vector<128x128xf32> to vector<128xf32>
    %48 = vector.shape_cast %47 : vector<128xf32> to vector<128x1xf32>
    %cst_22 = arith.constant 0.000000e+00 : f32
    %49 = vector.broadcast %cst_22 : f32 to vector<128x1xf32>
    %50 = arith.subf %49, %48 : vector<128x1xf32>
    %c8_i32_23 = arith.constant 8 : i32
    %51 = vector.broadcast %c8_i32_23 : i32 to vector<128x128xi32>
    %52 = arith.cmpi eq, %20, %51 : vector<128x128xi32>
    %cst_24 = arith.constant 0.000000e+00 : f32
    %53 = vector.broadcast %cst_24 : f32 to vector<128x128xf32>
    %54 = arith.select %52, %19, %53 : vector<128x128xi1>, vector<128x128xf32>
    %cst_25 = arith.constant dense<0.000000e+00> : vector<128xf32>
    %55 = vector.multi_reduction <add>, %54, %cst_25 [1] : vector<128x128xf32> to vector<128xf32>
    %56 = vector.shape_cast %55 : vector<128xf32> to vector<128x1xf32>
    %c0_i32 = arith.constant 0 : i32
    %57 = vector.broadcast %c0_i32 : i32 to vector<128x128xi32>
    %58 = arith.cmpi eq, %20, %57 : vector<128x128xi32>
    %c1_i32 = arith.constant 1 : i32
    %59 = vector.broadcast %c1_i32 : i32 to vector<128x128xi32>
    %60 = arith.cmpi eq, %20, %59 : vector<128x128xi32>
    %c2_i32 = arith.constant 2 : i32
    %61 = vector.broadcast %c2_i32 : i32 to vector<128x128xi32>
    %62 = arith.cmpi eq, %20, %61 : vector<128x128xi32>
    %cst_26 = arith.constant 0.000000e+00 : f32
    %63 = vector.shape_cast %56 : vector<128x1xf32> to vector<128x1xf32>
    %64 = vector.broadcast %63 : vector<128x1xf32> to vector<128x128xf32>
    %65 = vector.broadcast %cst_26 : f32 to vector<128x128xf32>
    %66 = arith.select %62, %64, %65 : vector<128x128xi1>, vector<128x128xf32>
    %67 = vector.shape_cast %50 : vector<128x1xf32> to vector<128x1xf32>
    %68 = vector.broadcast %67 : vector<128x1xf32> to vector<128x128xf32>
    %69 = arith.select %60, %68, %66 : vector<128x128xi1>, vector<128x128xf32>
    %70 = vector.shape_cast %45 : vector<128x1xf32> to vector<128x1xf32>
    %71 = vector.broadcast %70 : vector<128x1xf32> to vector<128x128xf32>
    %72 = arith.select %58, %71, %69 : vector<128x128xi1>, vector<128x128xf32>
    %c0_27 = arith.constant 0 : index
    %c0_28 = arith.constant 0 : index
    %73 = vector.load %arg9[%c0_27, %c0_28] : memref<128x128xf32, #tpu.memory_space<vmem>>, vector<128x128xf32>
    tpu.vector_store %arg9[%c0_27, %c0_28], %72 {strides = array<i32>} : memref<128x128xf32, #tpu.memory_space<vmem>>, vector<128x128xf32>,
    return
  }
  func.func @transform_0(%arg0: i32) -> (i32, i32) {
    %c0_i32 = arith.constant 0 : i32
    %c0_i32_0 = arith.constant 0 : i32
    return %arg0, %c0_i32 : i32, i32
  }
  func.func @transform_1(%arg0: i32) -> (i32, i32) {
    %c0_i32 = arith.constant 0 : i32
    %c0_i32_0 = arith.constant 0 : i32
    return %arg0, %c0_i32 : i32, i32
  }
  func.func @transform_2(%arg0: i32) -> (i32, i32) {
    %c0_i32 = arith.constant 0 : i32
    %c0_i32_0 = arith.constant 0 : i32
    %c0_i32_1 = arith.constant 0 : i32
    return %c0_i32, %c0_i32_0 : i32, i32
  }
  func.func @transform_3(%arg0: i32) -> (i32, i32) {
    %c0_i32 = arith.constant 0 : i32
    %c0_i32_0 = arith.constant 0 : i32
    %c0_i32_1 = arith.constant 0 : i32
    return %c0_i32, %c0_i32_0 : i32, i32
  }
  func.func @transform_4(%arg0: i32) -> (i32, i32) {
    %c0_i32 = arith.constant 0 : i32
    %c0_i32_0 = arith.constant 0 : i32
    %c0_i32_1 = arith.constant 0 : i32
    return %c0_i32, %c0_i32_0 : i32, i32
  }
  func.func @transform_5(%arg0: i32) -> (i32, i32) {
    %c0_i32 = arith.constant 0 : i32
    %c0_i32_0 = arith.constant 0 : i32
    %c0_i32_1 = arith.constant 0 : i32
    return %c0_i32, %c0_i32_0 : i32, i32
  }
  func.func @transform_6(%arg0: i32) -> (i32, i32) {
    %c0_i32 = arith.constant 0 : i32
    %c0_i32_0 = arith.constant 0 : i32
    %c0_i32_1 = arith.constant 0 : i32
    return %c0_i32, %c0_i32_0 : i32, i32
  }
  func.func @transform_7(%arg0: i32) -> (i32, i32) {
    %c0_i32 = arith.constant 0 : i32
    %c0_i32_0 = arith.constant 0 : i32
    %c0_i32_1 = arith.constant 0 : i32
    return %c0_i32, %c0_i32_0 : i32, i32
  }
  func.func @transform_8(%arg0: i32) -> (i32, i32) {
    %c0_i32 = arith.constant 0 : i32
    %c0_i32_0 = arith.constant 0 : i32
    return %arg0, %c0_i32 : i32, i32
  }
}

</mosaic_0001>

<llo_original>
// kernel: actor_critic_evaluate.1
$region0: #{actor_critic_evaluate.1}
  #allocation0 [shape = 'u32[]', space=smem, size = 0x4, offset = 0x4, fixed_abs, tag = 'smem constant byte address 0x4 - core index']
  #allocation1 [shape = 'u32[144,128]{1,0:T(1,128)}', space=vmem, size = 0x12000, scoped, tag = 'internal scratch']
  %s0 = inlined_call_operand.vmem [shape: bf16[256,16], index: 0, kind: input, shape index: {}]
  %s1 = inlined_call_operand.vmem [shape: s32[256,1], index: 1, kind: input, shape index: {}]
  %s2 = inlined_call_operand.vmem [shape: bf16[16,128], index: 2, kind: input, shape index: {}]
  %s3 = inlined_call_operand.vmem [shape: f32[1,128], index: 3, kind: input, shape index: {}]
  %s4 = inlined_call_operand.vmem [shape: bf16[128,128], index: 4, kind: input, shape index: {}]
  %s5 = inlined_call_operand.vmem [shape: f32[1,128], index: 5, kind: input, shape index: {}]
  %s6 = inlined_call_operand.vmem [shape: bf16[128,128], index: 6, kind: input, shape index: {}]
  %s7 = inlined_call_operand.vmem [shape: f32[1,128], index: 7, kind: input, shape index: {}]
  %s8 = inlined_call_operand.vmem [shape: f32[256,128], index: 8, kind: output, shape index: {}]
  %s9 = sld [smem:[#allocation0]]
  $region65: #{actor_critic_evaluate.1} parent=0
    _
  %s11 = ssub.s32 1, %s9
  %s12 = scalar_select 0, %s11, %s9
  loop: start=0, step=1, limit=4
  $region2: #{actor_critic_evaluate.1} parent=0 // loop_pre_header
    _
  $region3: #{actor_critic_evaluate.1} parent=0 // loop_header
    %s14 = sphi 0, %s18
    %p15 = scmp.ge.s32.totalorder %s14, 4
    %s24 = sphi 0, %s26
    %s27 = sphi 0, %s24
    %s28 = sphi 0, %s27
    %s44 = sphi 0, %s28
    %s50 = sphi 0, %s52
    %s53 = sphi 0, %s50
    %s54 = sphi 0, %s53
    %s70 = sphi 0, %s54
    %s74 = sphi 0, %s74
    %s76 = sphi 0, %s74
    %s77 = sphi 0, %s76
    %s91 = sphi 0, %s77
    %s95 = sphi 0, %s95
    %s97 = sphi 0, %s95
    %s98 = sphi 0, %s97
    %s112 = sphi 0, %s98
    %s116 = sphi 0, %s116
    %s118 = sphi 0, %s116
    %s119 = sphi 0, %s118
    %s133 = sphi 0, %s119
    %s137 = sphi 0, %s137
    %s139 = sphi 0, %s137
    %s140 = sphi 0, %s139
    %s154 = sphi 0, %s140
    %s158 = sphi 0, %s158
    %s160 = sphi 0, %s158
    %s161 = sphi 0, %s160
    %s175 = sphi 0, %s161
    %s179 = sphi 0, %s179
    %s181 = sphi 0, %s179
    %s182 = sphi 0, %s181
    %s196 = sphi 0, %s182
    %s202 = sphi 0, %s204
    %s205 = sphi 0, %s202
    %s206 = sphi 0, %s205
    %s222 = sphi 0, %s206
  $region4: #{actor_critic_evaluate.1} parent=0 // loop_header_branch
    %17 = sbr.rel (%p15) target = $region8
  $region5: #{actor_critic_evaluate.1} parent=0 // loop_body
    %s19 = ssub.s32 %s14, 1
    %s20 = ssub.s32 %s14, 2
    %s21 = sadd.s32 %s14, 1
    %s22 = ssub.s32 %s14, %s21
    %p23 = scmp.eq.s32.totalorder %s22, 0
    %s25 = sadd.s32 %s24, 1
    %s26 = scalar_select %p23, %s24, %s25
    %p29 = pneg %p23
    %p30 = scmp.eq.s32.totalorder %s14, 1
    %p31 = por %p29, %p30
    %p32 = scmp.ne.s32.totalorder %s24, %s27
    %p33 = scmp.eq.s32.totalorder %s14, 0
    %p34 = por %p32, %p33
    %p35 = scmp.ne.s32.totalorder %s24, %s27
    %p36 = scmp.eq.s32.totalorder %s19, 1
    %p37 = por %p35, %p36
    %p38 = scmp.ne.s32.totalorder %s27, %s28
    %p39 = scmp.eq.s32.totalorder %s19, 0
    %p40 = por %p38, %p39
    %p41 = scmp.ne.s32.totalorder %s27, %s28
    %p42 = scmp.eq.s32.totalorder %s20, 1
    %p43 = por %p41, %p42
    %p45 = scmp.ne.s32.totalorder %s28, %s44
    %p46 = scmp.eq.s32.totalorder %s20, 0
    %p47 = por %p45, %p46
    %s48 = ssub.s32 %s14, %s21
    %p49 = scmp.eq.s32.totalorder %s48, 0
    %s51 = sadd.s32 %s50, 1
    %s52 = scalar_select %p49, %s50, %s51
    %p55 = pneg %p49
    %p56 = scmp.eq.s32.totalorder %s14, 1
    %p57 = por %p55, %p56
    %p58 = scmp.ne.s32.totalorder %s50, %s53
    %p59 = scmp.eq.s32.totalorder %s14, 0
    %p60 = por %p58, %p59
    %p61 = scmp.ne.s32.totalorder %s50, %s53
    %p62 = scmp.eq.s32.totalorder %s19, 1
    %p63 = por %p61, %p62
    %p64 = scmp.ne.s32.totalorder %s53, %s54
    %p65 = scmp.eq.s32.totalorder %s19, 0
    %p66 = por %p64, %p65
    %p67 = scmp.ne.s32.totalorder %s53, %s54
    %p68 = scmp.eq.s32.totalorder %s20, 1
    %p69 = por %p67, %p68
    %p71 = scmp.ne.s32.totalorder %s54, %s70
    %p72 = scmp.eq.s32.totalorder %s20, 0
    %p73 = por %p71, %p72
    %s75 = sadd.s32 %s74, 1
    %p78 = scmp.eq.s32.totalorder %s14, 1
    %p79 = scmp.ne.s32.totalorder %s74, %s76
    %p80 = scmp.eq.s32.totalorder %s14, 0
    %p81 = por %p79, %p80
    %p82 = scmp.ne.s32.totalorder %s74, %s76
    %p83 = scmp.eq.s32.totalorder %s19, 1
    %p84 = por %p82, %p83
    %p85 = scmp.ne.s32.totalorder %s76, %s77
    %p86 = scmp.eq.s32.totalorder %s19, 0
    %p87 = por %p85, %p86
    %p88 = scmp.ne.s32.totalorder %s76, %s77
    %p89 = scmp.eq.s32.totalorder %s20, 1
    %p90 = por %p88, %p89
    %p92 = scmp.ne.s32.totalorder %s77, %s91
    %p93 = scmp.eq.s32.totalorder %s20, 0
    %p94 = por %p92, %p93
    %s96 = sadd.s32 %s95, 1
    %p99 = scmp.eq.s32.totalorder %s14, 1
    %p100 = scmp.ne.s32.totalorder %s95, %s97
    %p101 = scmp.eq.s32.totalorder %s14, 0
    %p102 = por %p100, %p101
    %p103 = scmp.ne.s32.totalorder %s95, %s97
    %p104 = scmp.eq.s32.totalorder %s19, 1
    %p105 = por %p103, %p104
    %p106 = scmp.ne.s32.totalorder %s97, %s98
    %p107 = scmp.eq.s32.totalorder %s19, 0
    %p108 = por %p106, %p107
    %p109 = scmp.ne.s32.totalorder %s97, %s98
    %p110 = scmp.eq.s32.totalorder %s20, 1
    %p111 = por %p109, %p110
    %p113 = scmp.ne.s32.totalorder %s98, %s112
    %p114 = scmp.eq.s32.totalorder %s20, 0
    %p115 = por %p113, %p114
    %s117 = sadd.s32 %s116, 1
    %p120 = scmp.eq.s32.totalorder %s14, 1
    %p121 = scmp.ne.s32.totalorder %s116, %s118
    %p122 = scmp.eq.s32.totalorder %s14, 0
    %p123 = por %p121, %p122
    %p124 = scmp.ne.s32.totalorder %s116, %s118
    %p125 = scmp.eq.s32.totalorder %s19, 1
    %p126 = por %p124, %p125
    %p127 = scmp.ne.s32.totalorder %s118, %s119
    %p128 = scmp.eq.s32.totalorder %s19, 0
    %p129 = por %p127, %p128
    %p130 = scmp.ne.s32.totalorder %s118, %s119
    %p131 = scmp.eq.s32.totalorder %s20, 1
    %p132 = por %p130, %p131
    %p134 = scmp.ne.s32.totalorder %s119, %s133
    %p135 = scmp.eq.s32.totalorder %s20, 0
    %p136 = por %p134, %p135
    %s138 = sadd.s32 %s137, 1
    %p141 = scmp.eq.s32.totalorder %s14, 1
    %p142 = scmp.ne.s32.totalorder %s137, %s139
    %p143 = scmp.eq.s32.totalorder %s14, 0
    %p144 = por %p142, %p143
    %p145 = scmp.ne.s32.totalorder %s137, %s139
    %p146 = scmp.eq.s32.totalorder %s19, 1
    %p147 = por %p145, %p146
    %p148 = scmp.ne.s32.totalorder %s139, %s140
    %p149 = scmp.eq.s32.totalorder %s19, 0
    %p150 = por %p148, %p149
    %p151 = scmp.ne.s32.totalorder %s139, %s140
    %p152 = scmp.eq.s32.totalorder %s20, 1
    %p153 = por %p151, %p152
    %p155 = scmp.ne.s32.totalorder %s140, %s154
    %p156 = scmp.eq.s32.totalorder %s20, 0
    %p157 = por %p155, %p156
    %s159 = sadd.s32 %s158, 1
    %p162 = scmp.eq.s32.totalorder %s14, 1
    %p163 = scmp.ne.s32.totalorder %s158, %s160
    %p164 = scmp.eq.s32.totalorder %s14, 0
    %p165 = por %p163, %p164
    %p166 = scmp.ne.s32.totalorder %s158, %s160
    %p167 = scmp.eq.s32.totalorder %s19, 1
    %p168 = por %p166, %p167
    %p169 = scmp.ne.s32.totalorder %s160, %s161
    %p170 = scmp.eq.s32.totalorder %s19, 0
    %p171 = por %p169, %p170
    %p172 = scmp.ne.s32.totalorder %s160, %s161
    %p173 = scmp.eq.s32.totalorder %s20, 1
    %p174 = por %p172, %p173
    %p176 = scmp.ne.s32.totalorder %s161, %s175
    %p177 = scmp.eq.s32.totalorder %s20, 0
    %p178 = por %p176, %p177
    %s180 = sadd.s32 %s179, 1
    %p183 = scmp.eq.s32.totalorder %s14, 1
    %p184 = scmp.ne.s32.totalorder %s179, %s181
    %p185 = scmp.eq.s32.totalorder %s14, 0
    %p186 = por %p184, %p185
    %p187 = scmp.ne.s32.totalorder %s179, %s181
    %p188 = scmp.eq.s32.totalorder %s19, 1
    %p189 = por %p187, %p188
    %p190 = scmp.ne.s32.totalorder %s181, %s182
    %p191 = scmp.eq.s32.totalorder %s19, 0
    %p192 = por %p190, %p191
    %p193 = scmp.ne.s32.totalorder %s181, %s182
    %p194 = scmp.eq.s32.totalorder %s20, 1
    %p195 = por %p193, %p194
    %p197 = scmp.ne.s32.totalorder %s182, %s196
    %p198 = scmp.eq.s32.totalorder %s20, 0
    %p199 = por %p197, %p198
    %s200 = ssub.s32 %s14, %s21
    %p201 = scmp.eq.s32.totalorder %s200, 0
    %s203 = sadd.s32 %s202, 1
    %s204 = scalar_select %p201, %s202, %s203
    %p207 = pneg %p201
    %p208 = scmp.eq.s32.totalorder %s14, 1
    %p209 = por %p207, %p208
    %p210 = scmp.ne.s32.totalorder %s202, %s205
    %p211 = scmp.eq.s32.totalorder %s14, 0
    %p212 = por %p210, %p211
    %p213 = scmp.ne.s32.totalorder %s202, %s205
    %p214 = scmp.eq.s32.totalorder %s19, 1
    %p215 = por %p213, %p214
    %p216 = scmp.ne.s32.totalorder %s205, %s206
    %p217 = scmp.eq.s32.totalorder %s19, 0
    %p218 = por %p216, %p217
    %p219 = scmp.ne.s32.totalorder %s205, %s206
    %p220 = scmp.eq.s32.totalorder %s20, 1
    %p221 = por %p219, %p220
    %p223 = scmp.ne.s32.totalorder %s206, %s222
    %p224 = scmp.eq.s32.totalorder %s20, 0
    %p225 = por %p223, %p224
    %p226 = scmp.le.s32.totalorder 1, %s14
    %p227 = scmp.lt.s32.totalorder %s14, 3
    %p228 = pnand %p226, %p227
    %p229 = pneg %p228
    // Predicated region
    $region9: #{actor_critic_evaluate.1} parent=5 // pred_check
      _
    $region10: #{actor_critic_evaluate.1} parent=5 // pred_check_branch
      %231 = sbr.rel (%p228) target = $region12
    $region11: #{actor_critic_evaluate.1} parent=5 // pred_region
      %s232 = ssub.s32 %s14, 1
      // Predicated region
      $region13: #{actor_critic_evaluate.1} parent=11 // pred_check
        %p233 = pneg %p87
      $region14: #{actor_critic_evaluate.1} parent=11 // pred_check_branch
        %235 = sbr.rel (%p233) target = $region16
      $region15: #{actor_critic_evaluate.1} parent=11 // pred_region
        _
      $region16: #{actor_critic_evaluate.1} parent=11 // pred_fallthru
        _
      // Predicated region
      $region17: #{actor_critic_evaluate.1} parent=11 // pred_check
        %p236 = pneg %p108
      $region18: #{actor_critic_evaluate.1} parent=11 // pred_check_branch
        %238 = sbr.rel (%p236) target = $region20
      $region19: #{actor_critic_evaluate.1} parent=11 // pred_region
        _
      $region20: #{actor_critic_evaluate.1} parent=11 // pred_fallthru
        _
      // Predicated region
      $region21: #{actor_critic_evaluate.1} parent=11 // pred_check
        %p239 = pneg %p129
      $region22: #{actor_critic_evaluate.1} parent=11 // pred_check_branch
        %241 = sbr.rel (%p239) target = $region24
      $region23: #{actor_critic_evaluate.1} parent=11 // pred_region
        _
      $region24: #{actor_critic_evaluate.1} parent=11 // pred_fallthru
        _
      // Predicated region
      $region25: #{actor_critic_evaluate.1} parent=11 // pred_check
        %p242 = pneg %p150
      $region26: #{actor_critic_evaluate.1} parent=11 // pred_check_branch
        %244 = sbr.rel (%p242) target = $region28
      $region27: #{actor_critic_evaluate.1} parent=11 // pred_region
        _
      $region28: #{actor_critic_evaluate.1} parent=11 // pred_fallthru
        _
      // Predicated region
      $region29: #{actor_critic_evaluate.1} parent=11 // pred_check
        %p245 = pneg %p171
      $region30: #{actor_critic_evaluate.1} parent=11 // pred_check_branch
        %247 = sbr.rel (%p245) target = $region32
      $region31: #{actor_critic_evaluate.1} parent=11 // pred_region
        _
      $region32: #{actor_critic_evaluate.1} parent=11 // pred_fallthru
        _
      // Predicated region
      $region33: #{actor_critic_evaluate.1} parent=11 // pred_check
        %p248 = pneg %p192
      $region34: #{actor_critic_evaluate.1} parent=11 // pred_check_branch
        %250 = sbr.rel (%p248) target = $region36
      $region35: #{actor_critic_evaluate.1} parent=11 // pred_region
        _
      $region36: #{actor_critic_evaluate.1} parent=11 // pred_fallthru
        _
    $region12: #{actor_critic_evaluate.1} parent=5 // pred_fallthru
      _
    %p251 = scmp.lt.s32.totalorder %s14, 2
    // Predicated region
    $region37: #{actor_critic_evaluate.1} parent=5 // pred_check
      %p252 = pneg %p251
    $region38: #{actor_critic_evaluate.1} parent=5 // pred_check_branch
      %254 = sbr.rel (%p252) target = $region40
    $region39: #{actor_critic_evaluate.1} parent=5 // pred_region
      // Predicated region
      $region41: #{actor_critic_evaluate.1} parent=39 // pred_check
        %p255 = pneg %p34
      $region42: #{actor_critic_evaluate.1} parent=39 // pred_check_branch
        %257 = sbr.rel (%p255) target = $region44
      $region43: #{actor_critic_evaluate.1} parent=39 // pred_region
        %s258 = smul.u32 16, %s14
        %p259 = scmp.lt.s32.totalorder %s258, 31
        %s260 = scalar_select %p259, %s258, 31
        %s261 = smul.addr %s260, 4
        %s262 = scalar_lea.vmem %s0, %s261
        %s263 = smul.u32 16, %s14
      $region44: #{actor_critic_evaluate.1} parent=39 // pred_fallthru
        _
      // Predicated region
      $region45: #{actor_critic_evaluate.1} parent=39 // pred_check
        %p264 = pneg %p60
      $region46: #{actor_critic_evaluate.1} parent=39 // pred_check_branch
        %266 = sbr.rel (%p264) target = $region48
      $region47: #{actor_critic_evaluate.1} parent=39 // pred_region
        %s267 = smul.u32 16, %s14
        %p268 = scmp.lt.s32.totalorder %s267, 31
        %s269 = scalar_select %p268, %s267, 31
        %s270 = smul.addr %s269, 8
        %s271 = scalar_lea.vmem %s1, %s270
        %s272 = smul.u32 16, %s14
      $region48: #{actor_critic_evaluate.1} parent=39 // pred_fallthru
        _
    $region40: #{actor_critic_evaluate.1} parent=5 // pred_fallthru
      _
    %p273 = scmp.le.s32.totalorder 1, %s14
    %p274 = scmp.lt.s32.totalorder %s14, 3
    %p275 = pnand %p273, %p274
    %p276 = pneg %p275
    // Predicated region
    $region49: #{actor_critic_evaluate.1} parent=5 // pred_check
      _
    $region50: #{actor_critic_evaluate.1} parent=5 // pred_check_branch
      %278 = sbr.rel (%p275) target = $region52
    $region51: #{actor_critic_evaluate.1} parent=5 // pred_region
      %s279 = ssub.s32 %s14, 1
      %s280 = smul.u32 16, %s19
      %p281 = scmp.lt.s32.totalorder %s280, 31
      %s282 = scalar_select %p281, %s280, 31
      %s283 = smul.addr %s282, 4
      %s284 = scalar_lea.vmem %s0, %s283
      %p285 = pneg %p40
      %p286 = pneg %p37
      %s287 = smul.u32 16, %s19
      %p288 = scmp.lt.s32.totalorder %s287, 31
      %s289 = scalar_select %p288, %s287, 31
      %s290 = smul.addr %s289, 8
      %s291 = scalar_lea.vmem %s1, %s290
      %p292 = pneg %p66
      %p293 = pneg %p63
      %p294 = pneg %p87
      %p295 = pneg %p84
      %p296 = pneg %p108
      %p297 = pneg %p105
      %p298 = pneg %p129
      %p299 = pneg %p126
      %p300 = pneg %p150
      %p301 = pneg %p147
      %p302 = pneg %p171
      %p303 = pneg %p168
      %p304 = pneg %p192
      %p305 = pneg %p189
      %p306 = pneg %p218
      %p307 = pneg %p215
      %s308 = smul.u32 16, %s19
      %p309 = scmp.lt.s32.totalorder %s308, 31
      %s310 = scalar_select %p309, %s308, 31
      %s311 = smul.addr %s310, 8
      %s312 = scalar_lea.vmem %s8, %s311
      %s313 = smul.u32 16, %s19
      %p314 = scmp.lt.s32.totalorder %s313, 31
      %s315 = scalar_select %p314, %s313, 31
      %s316 = smul.addr %s315, 4
      %s317 = scalar_lea.vmem %s0, %s316
      %s318 = smul.u32 16, %s19
      %s319 = smul.u32 16, %s19
      %p320 = scmp.lt.s32.totalorder %s319, 31
      %s321 = scalar_select %p320, %s319, 31
      %s322 = smul.addr %s321, 8
      %s323 = scalar_lea.vmem %s1, %s322
      %s324 = smul.u32 16, %s19
      %s325 = smul.u32 16, %s19
      %p326 = scmp.lt.s32.totalorder %s325, 31
      %s327 = scalar_select %p326, %s325, 31
      %s328 = smul.addr %s327, 8
      %s329 = scalar_lea.vmem %s8, %s328
      %s330 = smul.u32 16, %s19
      %v332 = vld [vmem:[%s317] sm:$0xf]
      %v333 = vld [vmem:[%s317 + $0x4] sm:$0xf]
      %v334 = vld [vmem:[%s317 + $0x8] sm:$0xf]
      %v335 = vld [vmem:[%s317 + $0xc] sm:$0xf]
      %v336 = vld [vmem:[%s317 + $0x10] sm:$0xf]
      %v337 = vld [vmem:[%s317 + $0x14] sm:$0xf]
      %v338 = vld [vmem:[%s317 + $0x18] sm:$0xf]
      %v339 = vld [vmem:[%s317 + $0x1c] sm:$0xf]
      %v340 = vld [vmem:[%s317 + $0x20] sm:$0xf]
      %v341 = vld [vmem:[%s317 + $0x24] sm:$0xf]
      %v342 = vld [vmem:[%s317 + $0x28] sm:$0xf]
      %v343 = vld [vmem:[%s317 + $0x2c] sm:$0xf]
      %v344 = vld [vmem:[%s317 + $0x30] sm:$0xf]
      %v345 = vld [vmem:[%s317 + $0x34] sm:$0xf]
      %v346 = vld [vmem:[%s317 + $0x38] sm:$0xf]
      %v347 = vld [vmem:[%s317 + $0x3c] sm:$0xf]
      %v348 = vld [vmem:[%s2] sm:$0xf]
      %v349 = vld [vmem:[%s2 + $0x4] sm:$0xf]
      %v350 = vld [vmem:[%s3] sm:$0x1]
      %v352 = vlaneseq
      %v353 = vshrl.u32 %v352, 7
      %v354 = vsub.s32 0, %v353
      %v355 = vrot.slane %v350, %v354
      %v373 = vunpack.c.l.b16 %v332
      %v374 = vunpack.c.l.b16 %v333
      %v375 = vunpack.c.l.b16 %v334
      %v376 = vunpack.c.l.b16 %v335
      %v377 = vunpack.c.l.b16 %v336
      %v378 = vunpack.c.l.b16 %v337
      %v379 = vunpack.c.l.b16 %v338
      %v380 = vunpack.c.l.b16 %v339
      %v381 = vunpack.c.l.b16 %v340
      %v382 = vunpack.c.l.b16 %v341
      %v383 = vunpack.c.l.b16 %v342
      %v384 = vunpack.c.l.b16 %v343
      %v385 = vunpack.c.l.b16 %v344
      %v386 = vunpack.c.l.b16 %v345
      %v387 = vunpack.c.l.b16 %v346
      %v388 = vunpack.c.l.b16 %v347
      %v389 = vpack.c.b16 %v374, %v373
      %v390 = vpack.c.b16 %v376, %v375
      %v391 = vpack.c.b16 %v378, %v377
      %v392 = vpack.c.b16 %v380, %v379
      %v393 = vpack.c.b16 %v382, %v381
      %v394 = vpack.c.b16 %v384, %v383
      %v395 = vpack.c.b16 %v386, %v385
      %v396 = vpack.c.b16 %v388, %v387
      %v399 = vunpack.c.l.b16 %v348
      %v400 = vunpack.c.l.b16 %v349
      %v401 = vpack.c.b16 %v400, %v399
      %vm403 = vcmask 130048
      %v405 = vsel %vm403, %v389, 0
      %v408 = vsel %vm403, %v390, 0
      %v411 = vsel %vm403, %v391, 0
      %v414 = vsel %vm403, %v392, 0
      %v417 = vsel %vm403, %v393, 0
      %v420 = vsel %vm403, %v394, 0
      %v423 = vsel %vm403, %v395, 0
      %v426 = vsel %vm403, %v396, 0
      %428 = vmatprep.subr.bf16.mxu0 0
      %429 = vmatpush1.bf16.msra.mxu0 %v401
      %430 = vmatprep.subr.bf16.mxu0 0
      %431 = vmatpush1.bf16.msra.mxu0 0
      %432 = vmatprep.subr.bf16.mxu0 0
      %433 = vmatpush1.bf16.msra.mxu0 0
      %434 = vmatprep.subr.bf16.mxu0 0
      %435 = vmatpush1.bf16.msra.mxu0 0
      %436 = vmatprep.subr.bf16.mxu0 0
      %437 = vmatpush1.bf16.msra.mxu0 0
      %438 = vmatprep.subr.bf16.mxu0 0
      %439 = vmatpush1.bf16.msra.mxu0 0
      %440 = vmatprep.subr.bf16.mxu0 0
      %441 = vmatpush1.bf16.msra.mxu0 0
      %442 = vmatprep.subr.bf16.mxu0 0
      %443 = vmatpush1.bf16.msra.mxu0 0
      %444 = vmatprep.subr.bf16.mxu0 0
      %445 = vmatpush1.bf16.msra.mxu0 0
      %446 = vmatprep.subr.bf16.mxu0 0
      %447 = vmatpush1.bf16.msra.mxu0 0
      %448 = vmatprep.subr.bf16.mxu0 0
      %449 = vmatpush1.bf16.msra.mxu0 0
      %450 = vmatprep.subr.bf16.mxu0 0
      %451 = vmatpush1.bf16.msra.mxu0 0
      %452 = vmatprep.subr.bf16.mxu0 0
      %453 = vmatpush1.bf16.msra.mxu0 0
      %454 = vmatprep.subr.bf16.mxu0 0
      %455 = vmatpush1.bf16.msra.mxu0 0
      %456 = vmatprep.subr.bf16.mxu0 0
      %457 = vmatpush1.bf16.msra.mxu0 0
      %458 = vmatprep.subr.bf16.mxu0 0
      %459 = vmatpush1.bf16.msra.mxu0 0
      %460 = vmatprep.mubr.bf16.mxu0 0
      %461 = vmatmul.mubr.bf16.gmra.mrb[0].mxu0 %v405
      %v462 = vpop.f32.mrb[0].mxu0
      %v463 = vadd.f32 %v355, %v462
      %v464 = vpop.f32.mrb[0].mxu0
      %v465 = vpop.f32.mrb[0].mxu0
      %v466 = vadd.f32 %v355, %v465
      %v467 = vpop.f32.mrb[0].mxu0
      %468 = vmatprep.mubr.bf16.mxu0 0
      %469 = vmatmul.mubr.bf16.gmra.mrb[0].mxu0 %v408
      %v470 = vpop.f32.mrb[0].mxu0
      %v471 = vadd.f32 %v355, %v470
      %v472 = vpop.f32.mrb[0].mxu0
      %v473 = vpop.f32.mrb[0].mxu0
      %v474 = vadd.f32 %v355, %v473
      %v475 = vpop.f32.mrb[0].mxu0
      %476 = vmatprep.mubr.bf16.mxu0 0
      %477 = vmatmul.mubr.bf16.gmra.mrb[0].mxu0 %v411
      %v478 = vpop.f32.mrb[0].mxu0
      %v479 = vadd.f32 %v355, %v478
      %v480 = vpop.f32.mrb[0].mxu0
      %v481 = vpop.f32.mrb[0].mxu0
      %v482 = vadd.f32 %v355, %v481
      %v483 = vpop.f32.mrb[0].mxu0
      %484 = vmatprep.mubr.bf16.mxu0 0
      %485 = vmatmul.mubr.bf16.gmra.mrb[0].mxu0 %v414
      %v486 = vpop.f32.mrb[0].mxu0
      %v487 = vadd.f32 %v355, %v486
      %v488 = vpop.f32.mrb[0].mxu0
      %v489 = vpop.f32.mrb[0].mxu0
      %v490 = vadd.f32 %v355, %v489
      %v491 = vpop.f32.mrb[0].mxu0
      %492 = vmatprep.mubr.bf16.mxu0 0
      %493 = vmatmul.mubr.bf16.gmra.mrb[0].mxu0 %v417
      %v494 = vpop.f32.mrb[0].mxu0
      %v495 = vadd.f32 %v355, %v494
      %v496 = vpop.f32.mrb[0].mxu0
      %v497 = vpop.f32.mrb[0].mxu0
      %v498 = vadd.f32 %v355, %v497
      %v499 = vpop.f32.mrb[0].mxu0
      %500 = vmatprep.mubr.bf16.mxu0 0
      %501 = vmatmul.mubr.bf16.gmra.mrb[0].mxu0 %v420
      %v502 = vpop.f32.mrb[0].mxu0
      %v503 = vadd.f32 %v355, %v502
      %v504 = vpop.f32.mrb[0].mxu0
      %v505 = vpop.f32.mrb[0].mxu0
      %v506 = vadd.f32 %v355, %v505
      %v507 = vpop.f32.mrb[0].mxu0
      %508 = vmatprep.mubr.bf16.mxu0 0
      %509 = vmatmul.mubr.bf16.gmra.mrb[0].mxu0 %v423
      %v510 = vpop.f32.mrb[0].mxu0
      %v511 = vadd.f32 %v355, %v510
      %v512 = vpop.f32.mrb[0].mxu0
      %v513 = vpop.f32.mrb[0].mxu0
      %v514 = vadd.f32 %v355, %v513
      %v515 = vpop.f32.mrb[0].mxu0
      %516 = vmatprep.mubr.bf16.mxu0 0
      %517 = vmatmul.mubr.bf16.gmra.mrb[0].mxu0 %v426
      %v518 = vpop.f32.mrb[0].mxu0
      %v519 = vadd.f32 %v355, %v518
      %v520 = vpop.f32.mrb[0].mxu0
      %v521 = vpop.f32.mrb[0].mxu0
      %v522 = vadd.f32 %v355, %v521
      %v523 = vpop.f32.mrb[0].mxu0
      %524 = vdwg.mxu0
      %v525 = vtanh.pop %v463
      %v526 = vtanh.pop %v466
      %v527 = vtanh.pop %v471
      %v528 = vtanh.pop %v474
      %v529 = vtanh.pop %v479
      %v530 = vtanh.pop %v482
      %v531 = vtanh.pop %v487
      %v532 = vtanh.pop %v490
      %v533 = vtanh.pop %v495
      %v534 = vtanh.pop %v498
      %v535 = vtanh.pop %v503
      %v536 = vtanh.pop %v506
      %v537 = vtanh.pop %v511
      %v538 = vtanh.pop %v514
      %v539 = vtanh.pop %v519
      %v540 = vtanh.pop %v522
      %v541 = vpack.c.bf16 %v526, %v525
      %v542 = vpack.c.bf16 %v528, %v527
      %v543 = vpack.c.bf16 %v530, %v529
      %v544 = vpack.c.bf16 %v532, %v531
      %v545 = vpack.c.bf16 %v534, %v533
      %v546 = vpack.c.bf16 %v536, %v535
      %v547 = vpack.c.bf16 %v538, %v537
      %v548 = vpack.c.bf16 %v540, %v539
      %v549 = vld [vmem:[%s4] sm:$0xf]
      %v550 = vld [vmem:[%s4 + $0x4] sm:$0xf]
      %v551 = vld [vmem:[%s4 + $0x8] sm:$0xf]
      %v552 = vld [vmem:[%s4 + $0xc] sm:$0xf]
      %v553 = vld [vmem:[%s4 + $0x10] sm:$0xf]
      %v554 = vld [vmem:[%s4 + $0x14] sm:$0xf]
      %v555 = vld [vmem:[%s4 + $0x18] sm:$0xf]
      %v556 = vld [vmem:[%s4 + $0x1c] sm:$0xf]
      %v557 = vld [vmem:[%s4 + $0x20] sm:$0xf]
      %v558 = vld [vmem:[%s4 + $0x24] sm:$0xf]
      %v559 = vld [vmem:[%s4 + $0x28] sm:$0xf]
      %v560 = vld [vmem:[%s4 + $0x2c] sm:$0xf]
      %v561 = vld [vmem:[%s4 + $0x30] sm:$0xf]
      %v562 = vld [vmem:[%s4 + $0x34] sm:$0xf]
      %v563 = vld [vmem:[%s4 + $0x38] sm:$0xf]
      %v564 = vld [vmem:[%s4 + $0x3c] sm:$0xf]
      %v565 = vld [vmem:[%s5] sm:$0x1]
      %v567 = vlaneseq
      %v568 = vshrl.u32 %v567, 7
      %v569 = vsub.s32 0, %v568
      %v570 = vrot.slane %v565, %v569
      %v588 = vunpack.c.l.b16 %v549
      %v589 = vunpack.c.l.b16 %v550
      %v590 = vunpack.c.l.b16 %v551
      %v591 = vunpack.c.l.b16 %v552
      %v592 = vunpack.c.l.b16 %v553
      %v593 = vunpack.c.l.b16 %v554
      %v594 = vunpack.c.l.b16 %v555
      %v595 = vunpack.c.l.b16 %v556
      %v596 = vunpack.c.l.b16 %v557
      %v597 = vunpack.c.l.b16 %v558
      %v598 = vunpack.c.l.b16 %v559
      %v599 = vunpack.c.l.b16 %v560
      %v600 = vunpack.c.l.b16 %v561
      %v601 = vunpack.c.l.b16 %v562
      %v602 = vunpack.c.l.b16 %v563
      %v603 = vunpack.c.l.b16 %v564
      %v604 = vpack.c.b16 %v589, %v588
      %v605 = vpack.c.b16 %v591, %v590
      %v606 = vpack.c.b16 %v593, %v592
      %v607 = vpack.c.b16 %v595, %v594
      %v608 = vpack.c.b16 %v597, %v596
      %v609 = vpack.c.b16 %v599, %v598
      %v610 = vpack.c.b16 %v601, %v600
      %v611 = vpack.c.b16 %v603, %v602
      %620 = vmatprep.subr.bf16.mxu0 0
      %621 = vmatpush1.bf16.msra.mxu0 %v604
      %622 = vmatprep.subr.bf16.mxu0 0
      %623 = vmatpush1.bf16.msra.mxu0 %v605
      %624 = vmatprep.subr.bf16.mxu0 0
      %625 = vmatpush1.bf16.msra.mxu0 %v606
      %626 = vmatprep.subr.bf16.mxu0 0
      %627 = vmatpush1.bf16.msra.mxu0 %v607
      %628 = vmatprep.subr.bf16.mxu0 0
      %629 = vmatpush1.bf16.msra.mxu0 %v608
      %630 = vmatprep.subr.bf16.mxu0 0
      %631 = vmatpush1.bf16.msra.mxu0 %v609
      %632 = vmatprep.subr.bf16.mxu0 0
      %633 = vmatpush1.bf16.msra.mxu0 %v610
      %634 = vmatprep.subr.bf16.mxu0 0
      %635 = vmatpush1.bf16.msra.mxu0 %v611
      %636 = vmatprep.subr.bf16.mxu0 0
      %637 = vmatpush1.bf16.msra.mxu0 0
      %638 = vmatprep.subr.bf16.mxu0 0
      %639 = vmatpush1.bf16.msra.mxu0 0
      %640 = vmatprep.subr.bf16.mxu0 0
      %641 = vmatpush1.bf16.msra.mxu0 0
      %642 = vmatprep.subr.bf16.mxu0 0
      %643 = vmatpush1.bf16.msra.mxu0 0
      %644 = vmatprep.subr.bf16.mxu0 0
      %645 = vmatpush1.bf16.msra.mxu0 0
      %646 = vmatprep.subr.bf16.mxu0 0
      %647 = vmatpush1.bf16.msra.mxu0 0
      %648 = vmatprep.subr.bf16.mxu0 0
      %649 = vmatpush1.bf16.msra.mxu0 0
      %650 = vmatprep.subr.bf16.mxu0 0
      %651 = vmatpush1.bf16.msra.mxu0 0
      %652 = vmatprep.mubr.bf16.mxu0 0
      %653 = vmatmul.mubr.bf16.gmra.mrb[0].mxu0 %v541
      %v654 = vpop.f32.mrb[0].mxu0
      %v655 = vadd.f32 %v570, %v654
      %v656 = vpop.f32.mrb[0].mxu0
      %v657 = vpop.f32.mrb[0].mxu0
      %v658 = vadd.f32 %v570, %v657
      %v659 = vpop.f32.mrb[0].mxu0
      %660 = vmatprep.mubr.bf16.mxu0 0
      %661 = vmatmul.mubr.bf16.gmra.mrb[0].mxu0 %v542
      %v662 = vpop.f32.mrb[0].mxu0
      %v663 = vadd.f32 %v570, %v662
      %v664 = vpop.f32.mrb[0].mxu0
      %v665 = vpop.f32.mrb[0].mxu0
      %v666 = vadd.f32 %v570, %v665
      %v667 = vpop.f32.mrb[0].mxu0
      %668 = vmatprep.mubr.bf16.mxu0 0
      %669 = vmatmul.mubr.bf16.gmra.mrb[0].mxu0 %v543
      %v670 = vpop.f32.mrb[0].mxu0
      %v671 = vadd.f32 %v570, %v670
      %v672 = vpop.f32.mrb[0].mxu0
      %v673 = vpop.f32.mrb[0].mxu0
      %v674 = vadd.f32 %v570, %v673
      %v675 = vpop.f32.mrb[0].mxu0
      %676 = vmatprep.mubr.bf16.mxu0 0
      %677 = vmatmul.mubr.bf16.gmra.mrb[0].mxu0 %v544
      %v678 = vpop.f32.mrb[0].mxu0
      %v679 = vadd.f32 %v570, %v678
      %v680 = vpop.f32.mrb[0].mxu0
      %v681 = vpop.f32.mrb[0].mxu0
      %v682 = vadd.f32 %v570, %v681
      %v683 = vpop.f32.mrb[0].mxu0
      %684 = vmatprep.mubr.bf16.mxu0 0
      %685 = vmatmul.mubr.bf16.gmra.mrb[0].mxu0 %v545
      %v686 = vpop.f32.mrb[0].mxu0
      %v687 = vadd.f32 %v570, %v686
      %v688 = vpop.f32.mrb[0].mxu0
      %v689 = vpop.f32.mrb[0].mxu0
      %v690 = vadd.f32 %v570, %v689
      %v691 = vpop.f32.mrb[0].mxu0
      %692 = vmatprep.mubr.bf16.mxu0 0
      %693 = vmatmul.mubr.bf16.gmra.mrb[0].mxu0 %v546
      %v694 = vpop.f32.mrb[0].mxu0
      %v695 = vadd.f32 %v570, %v694
      %v696 = vpop.f32.mrb[0].mxu0
      %v697 = vpop.f32.mrb[0].mxu0
      %v698 = vadd.f32 %v570, %v697
      %v699 = vpop.f32.mrb[0].mxu0
      %700 = vmatprep.mubr.bf16.mxu0 0
      %701 = vmatmul.mubr.bf16.gmra.mrb[0].mxu0 %v547
      %v702 = vpop.f32.mrb[0].mxu0
      %v703 = vadd.f32 %v570, %v702
      %v704 = vpop.f32.mrb[0].mxu0
      %v705 = vpop.f32.mrb[0].mxu0
      %v706 = vadd.f32 %v570, %v705
      %v707 = vpop.f32.mrb[0].mxu0
      %708 = vmatprep.mubr.bf16.mxu0 0
      %709 = vmatmul.mubr.bf16.gmra.mrb[0].mxu0 %v548
      %v710 = vpop.f32.mrb[0].mxu0
      %v711 = vadd.f32 %v570, %v710
      %v712 = vpop.f32.mrb[0].mxu0
      %v713 = vpop.f32.mrb[0].mxu0
      %v714 = vadd.f32 %v570, %v713
      %v715 = vpop.f32.mrb[0].mxu0
      %716 = vdwg.mxu0
      %v717 = vtanh.pop %v655
      %v718 = vtanh.pop %v658
      %v719 = vtanh.pop %v663
      %v720 = vtanh.pop %v666
      %v721 = vtanh.pop %v671
      %v722 = vtanh.pop %v674
      %v723 = vtanh.pop %v679
      %v724 = vtanh.pop %v682
      %v725 = vtanh.pop %v687
      %v726 = vtanh.pop %v690
      %v727 = vtanh.pop %v695
      %v728 = vtanh.pop %v698
      %v729 = vtanh.pop %v703
      %v730 = vtanh.pop %v706
      %v731 = vtanh.pop %v711
      %v732 = vtanh.pop %v714
      %v733 = vpack.c.bf16 %v718, %v717
      %v734 = vpack.c.bf16 %v720, %v719
      %v735 = vpack.c.bf16 %v722, %v721
      %v736 = vpack.c.bf16 %v724, %v723
      %v737 = vpack.c.bf16 %v726, %v725
      %v738 = vpack.c.bf16 %v728, %v727
      %v739 = vpack.c.bf16 %v730, %v729
      %v740 = vpack.c.bf16 %v732, %v731
      %v741 = vld [vmem:[%s6] sm:$0xf]
      %v742 = vld [vmem:[%s6 + $0x4] sm:$0xf]
      %v743 = vld [vmem:[%s6 + $0x8] sm:$0xf]
      %v744 = vld [vmem:[%s6 + $0xc] sm:$0xf]
      %v745 = vld [vmem:[%s6 + $0x10] sm:$0xf]
      %v746 = vld [vmem:[%s6 + $0x14] sm:$0xf]
      %v747 = vld [vmem:[%s6 + $0x18] sm:$0xf]
      %v748 = vld [vmem:[%s6 + $0x1c] sm:$0xf]
      %v749 = vld [vmem:[%s6 + $0x20] sm:$0xf]
      %v750 = vld [vmem:[%s6 + $0x24] sm:$0xf]
      %v751 = vld [vmem:[%s6 + $0x28] sm:$0xf]
      %v752 = vld [vmem:[%s6 + $0x2c] sm:$0xf]
      %v753 = vld [vmem:[%s6 + $0x30] sm:$0xf]
      %v754 = vld [vmem:[%s6 + $0x34] sm:$0xf]
      %v755 = vld [vmem:[%s6 + $0x38] sm:$0xf]
      %v756 = vld [vmem:[%s6 + $0x3c] sm:$0xf]
      %v757 = vld [vmem:[%s7] sm:$0x1]
      %v759 = vlaneseq
      %v760 = vshrl.u32 %v759, 7
      %v761 = vsub.s32 0, %v760
      %v762 = vrot.slane %v757, %v761
      %v780 = vunpack.c.l.b16 %v741
      %v781 = vunpack.c.l.b16 %v742
      %v782 = vunpack.c.l.b16 %v743
      %v783 = vunpack.c.l.b16 %v744
      %v784 = vunpack.c.l.b16 %v745
      %v785 = vunpack.c.l.b16 %v746
      %v786 = vunpack.c.l.b16 %v747
      %v787 = vunpack.c.l.b16 %v748
      %v788 = vunpack.c.l.b16 %v749
      %v789 = vunpack.c.l.b16 %v750
      %v790 = vunpack.c.l.b16 %v751
      %v791 = vunpack.c.l.b16 %v752
      %v792 = vunpack.c.l.b16 %v753
      %v793 = vunpack.c.l.b16 %v754
      %v794 = vunpack.c.l.b16 %v755
      %v795 = vunpack.c.l.b16 %v756
      %v796 = vpack.c.b16 %v781, %v780
      %v797 = vpack.c.b16 %v783, %v782
      %v798 = vpack.c.b16 %v785, %v784
      %v799 = vpack.c.b16 %v787, %v786
      %v800 = vpack.c.b16 %v789, %v788
      %v801 = vpack.c.b16 %v791, %v790
      %v802 = vpack.c.b16 %v793, %v792
      %v803 = vpack.c.b16 %v795, %v794
      %812 = vmatprep.subr.bf16.mxu0 0
      %813 = vmatpush1.bf16.msra.mxu0 %v796
      %814 = vmatprep.subr.bf16.mxu0 0
      %815 = vmatpush1.bf16.msra.mxu0 %v797
      %816 = vmatprep.subr.bf16.mxu0 0
      %817 = vmatpush1.bf16.msra.mxu0 %v798
      %818 = vmatprep.subr.bf16.mxu0 0
      %819 = vmatpush1.bf16.msra.mxu0 %v799
      %820 = vmatprep.subr.bf16.mxu0 0
      %821 = vmatpush1.bf16.msra.mxu0 %v800
      %822 = vmatprep.subr.bf16.mxu0 0
      %823 = vmatpush1.bf16.msra.mxu0 %v801
      %824 = vmatprep.subr.bf16.mxu0 0
      %825 = vmatpush1.bf16.msra.mxu0 %v802
      %826 = vmatprep.subr.bf16.mxu0 0
      %827 = vmatpush1.bf16.msra.mxu0 %v803
      %828 = vmatprep.subr.bf16.mxu0 0
      %829 = vmatpush1.bf16.msra.mxu0 0
      %830 = vmatprep.subr.bf16.mxu0 0
      %831 = vmatpush1.bf16.msra.mxu0 0
      %832 = vmatprep.subr.bf16.mxu0 0
      %833 = vmatpush1.bf16.msra.mxu0 0
      %834 = vmatprep.subr.bf16.mxu0 0
      %835 = vmatpush1.bf16.msra.mxu0 0
      %836 = vmatprep.subr.bf16.mxu0 0
      %837 = vmatpush1.bf16.msra.mxu0 0
      %838 = vmatprep.subr.bf16.mxu0 0
      %839 = vmatpush1.bf16.msra.mxu0 0
      %840 = vmatprep.subr.bf16.mxu0 0
      %841 = vmatpush1.bf16.msra.mxu0 0
      %842 = vmatprep.subr.bf16.mxu0 0
      %843 = vmatpush1.bf16.msra.mxu0 0
      %844 = vmatprep.mubr.bf16.mxu0 0
      %845 = vmatmul.mubr.bf16.gmra.mrb[0].mxu0 %v733
      %v846 = vpop.f32.mrb[0].mxu0
      %v847 = vadd.f32 %v762, %v846
      %v848 = vpop.f32.mrb[0].mxu0
      %v849 = vpop.f32.mrb[0].mxu0
      %v850 = vadd.f32 %v762, %v849
      %v851 = vpop.f32.mrb[0].mxu0
      %852 = vmatprep.mubr.bf16.mxu0 0
      %853 = vmatmul.mubr.bf16.gmra.mrb[0].mxu0 %v734
      %v854 = vpop.f32.mrb[0].mxu0
      %v855 = vadd.f32 %v762, %v854
      %v856 = vpop.f32.mrb[0].mxu0
      %v857 = vpop.f32.mrb[0].mxu0
      %v858 = vadd.f32 %v762, %v857
      %v859 = vpop.f32.mrb[0].mxu0
      %860 = vmatprep.mubr.bf16.mxu0 0
      %861 = vmatmul.mubr.bf16.gmra.mrb[0].mxu0 %v735
      %v862 = vpop.f32.mrb[0].mxu0
      %v863 = vadd.f32 %v762, %v862
      %v864 = vpop.f32.mrb[0].mxu0
      %v865 = vpop.f32.mrb[0].mxu0
      %v866 = vadd.f32 %v762, %v865
      %v867 = vpop.f32.mrb[0].mxu0
      %868 = vmatprep.mubr.bf16.mxu0 0
      %869 = vmatmul.mubr.bf16.gmra.mrb[0].mxu0 %v736
      %v870 = vpop.f32.mrb[0].mxu0
      %v871 = vadd.f32 %v762, %v870
      %v872 = vpop.f32.mrb[0].mxu0
      %v873 = vpop.f32.mrb[0].mxu0
      %v874 = vadd.f32 %v762, %v873
      %v875 = vpop.f32.mrb[0].mxu0
      %876 = vmatprep.mubr.bf16.mxu0 0
      %877 = vmatmul.mubr.bf16.gmra.mrb[0].mxu0 %v737
      %v878 = vpop.f32.mrb[0].mxu0
      %v879 = vadd.f32 %v762, %v878
      %v880 = vpop.f32.mrb[0].mxu0
      %v881 = vpop.f32.mrb[0].mxu0
      %v882 = vadd.f32 %v762, %v881
      %v883 = vpop.f32.mrb[0].mxu0
      %884 = vmatprep.mubr.bf16.mxu0 0
      %885 = vmatmul.mubr.bf16.gmra.mrb[0].mxu0 %v738
      %v886 = vpop.f32.mrb[0].mxu0
      %v887 = vadd.f32 %v762, %v886
      %v888 = vpop.f32.mrb[0].mxu0
      %v889 = vpop.f32.mrb[0].mxu0
      %v890 = vadd.f32 %v762, %v889
      %v891 = vpop.f32.mrb[0].mxu0
      %892 = vmatprep.mubr.bf16.mxu0 0
      %893 = vmatmul.mubr.bf16.gmra.mrb[0].mxu0 %v739
      %v894 = vpop.f32.mrb[0].mxu0
      %v895 = vadd.f32 %v762, %v894
      %v896 = vpop.f32.mrb[0].mxu0
      %v897 = vpop.f32.mrb[0].mxu0
      %v898 = vadd.f32 %v762, %v897
      %v899 = vpop.f32.mrb[0].mxu0
      %900 = vmatprep.mubr.bf16.mxu0 0
      %901 = vmatmul.mubr.bf16.gmra.mrb[0].mxu0 %v740
      %v902 = vpop.f32.mrb[0].mxu0
      %v903 = vadd.f32 %v762, %v902
      %v904 = vpop.f32.mrb[0].mxu0
      %v905 = vpop.f32.mrb[0].mxu0
      %v906 = vadd.f32 %v762, %v905
      %v907 = vpop.f32.mrb[0].mxu0
      %908 = vdwg.mxu0
      %v909 = vlaneseq
      %v910 = vand.u32 %v909, 127
      %vm911 = vcmp.lt.s32.totalorder %v910, 8
      %v912 = vsel %vm911, %v847, -1e+30
      %v913 = vsel %vm911, %v850, -1e+30
      %v914 = vsel %vm911, %v855, -1e+30
      %v915 = vsel %vm911, %v858, -1e+30
      %v916 = vsel %vm911, %v863, -1e+30
      %v917 = vsel %vm911, %v866, -1e+30
      %v918 = vsel %vm911, %v871, -1e+30
      %v919 = vsel %vm911, %v874, -1e+30
      %v920 = vsel %vm911, %v879, -1e+30
      %v921 = vsel %vm911, %v882, -1e+30
      %v922 = vsel %vm911, %v887, -1e+30
      %v923 = vsel %vm911, %v890, -1e+30
      %v924 = vsel %vm911, %v895, -1e+30
      %v925 = vsel %vm911, %v898, -1e+30
      %v926 = vsel %vm911, %v903, -1e+30
      %v927 = vsel %vm911, %v906, -1e+30
      %928 = vmax.xlane.f32.xlu0 %v912
      %v929 = vpop.xlane.xlu0 %928
      %930 = vmax.xlane.f32.xlu0 %v913
      %v931 = vpop.xlane.xlu0 %930
      %932 = vmax.xlane.f32.xlu0 %v914
      %v933 = vpop.xlane.xlu0 %932
      %934 = vmax.xlane.f32.xlu0 %v915
      %v935 = vpop.xlane.xlu0 %934
      %936 = vmax.xlane.f32.xlu0 %v916
      %v937 = vpop.xlane.xlu0 %936
      %938 = vmax.xlane.f32.xlu0 %v917
      %v939 = vpop.xlane.xlu0 %938
      %940 = vmax.xlane.f32.xlu0 %v918
      %v941 = vpop.xlane.xlu0 %940
      %942 = vmax.xlane.f32.xlu0 %v919
      %v943 = vpop.xlane.xlu0 %942
      %944 = vmax.xlane.f32.xlu0 %v920
      %v945 = vpop.xlane.xlu0 %944
      %946 = vmax.xlane.f32.xlu0 %v921
      %v947 = vpop.xlane.xlu0 %946
      %948 = vmax.xlane.f32.xlu0 %v922
      %v949 = vpop.xlane.xlu0 %948
      %950 = vmax.xlane.f32.xlu0 %v923
      %v951 = vpop.xlane.xlu0 %950
      %952 = vmax.xlane.f32.xlu0 %v924
      %v953 = vpop.xlane.xlu0 %952
      %954 = vmax.xlane.f32.xlu0 %v925
      %v955 = vpop.xlane.xlu0 %954
      %956 = vmax.xlane.f32.xlu0 %v926
      %v957 = vpop.xlane.xlu0 %956
      %958 = vmax.xlane.f32.xlu0 %v927
      %v959 = vpop.xlane.xlu0 %958
      %v960 = vsub.f32 %v912, %v929
      %v961 = vsub.f32 %v913, %v931
      %v962 = vsub.f32 %v914, %v933
      %v963 = vsub.f32 %v915, %v935
      %v964 = vsub.f32 %v916, %v937
      %v965 = vsub.f32 %v917, %v939
      %v966 = vsub.f32 %v918, %v941
      %v967 = vsub.f32 %v919, %v943
      %v968 = vsub.f32 %v920, %v945
      %v969 = vsub.f32 %v921, %v947
      %v970 = vsub.f32 %v922, %v949
      %v971 = vsub.f32 %v923, %v951
      %v972 = vsub.f32 %v924, %v953
      %v973 = vsub.f32 %v925, %v955
      %v974 = vsub.f32 %v926, %v957
      %v975 = vsub.f32 %v927, %v959
      %v976 = vmul.f32 %v960, 1.442695
      %v977 = vpow.pop %v976
      %v978 = vmul.f32 %v961, 1.442695
      %v979 = vpow.pop %v978
      %v980 = vmul.f32 %v962, 1.442695
      %v981 = vpow.pop %v980
      %v982 = vmul.f32 %v963, 1.442695
      %v983 = vpow.pop %v982
      %v984 = vmul.f32 %v964, 1.442695
      %v985 = vpow.pop %v984
      %v986 = vmul.f32 %v965, 1.442695
      %v987 = vpow.pop %v986
      %v988 = vmul.f32 %v966, 1.442695
      %v989 = vpow.pop %v988
      %v990 = vmul.f32 %v967, 1.442695
      %v991 = vpow.pop %v990
      %v992 = vmul.f32 %v968, 1.442695
      %v993 = vpow.pop %v992
      %v994 = vmul.f32 %v969, 1.442695
      %v995 = vpow.pop %v994
      %v996 = vmul.f32 %v970, 1.442695
      %v997 = vpow.pop %v996
      %v998 = vmul.f32 %v971, 1.442695
      %v999 = vpow.pop %v998
      %v1000 = vmul.f32 %v972, 1.442695
      %v1001 = vpow.pop %v1000
      %v1002 = vmul.f32 %v973, 1.442695
      %v1003 = vpow.pop %v1002
      %v1004 = vmul.f32 %v974, 1.442695
      %v1005 = vpow.pop %v1004
      %v1006 = vmul.f32 %v975, 1.442695
      %v1007 = vpow.pop %v1006
      %1008 = vadd.xlane.f32.xlu0 %v977
      %v1009 = vpop.xlane.xlu0 %1008
      %1010 = vadd.xlane.f32.xlu0 %v979
      %v1011 = vpop.xlane.xlu0 %1010
      %1012 = vadd.xlane.f32.xlu0 %v981
      %v1013 = vpop.xlane.xlu0 %1012
      %1014 = vadd.xlane.f32.xlu0 %v983
      %v1015 = vpop.xlane.xlu0 %1014
      %1016 = vadd.xlane.f32.xlu0 %v985
      %v1017 = vpop.xlane.xlu0 %1016
      %1018 = vadd.xlane.f32.xlu0 %v987
      %v1019 = vpop.xlane.xlu0 %1018
      %1020 = vadd.xlane.f32.xlu0 %v989
      %v1021 = vpop.xlane.xlu0 %1020
      %1022 = vadd.xlane.f32.xlu0 %v991
      %v1023 = vpop.xlane.xlu0 %1022
      %1024 = vadd.xlane.f32.xlu0 %v993
      %v1025 = vpop.xlane.xlu0 %1024
      %1026 = vadd.xlane.f32.xlu0 %v995
      %v1027 = vpop.xlane.xlu0 %1026
      %1028 = vadd.xlane.f32.xlu0 %v997
      %v1029 = vpop.xlane.xlu0 %1028
      %1030 = vadd.xlane.f32.xlu0 %v999
      %v1031 = vpop.xlane.xlu0 %1030
      %1032 = vadd.xlane.f32.xlu0 %v1001
      %v1033 = vpop.xlane.xlu0 %1032
      %1034 = vadd.xlane.f32.xlu0 %v1003
      %v1035 = vpop.xlane.xlu0 %1034
      %1036 = vadd.xlane.f32.xlu0 %v1005
      %v1037 = vpop.xlane.xlu0 %1036
      %1038 = vadd.xlane.f32.xlu0 %v1007
      %v1039 = vpop.xlane.xlu0 %1038
      %v1040 = vlog2.pop %v1009
      %v1041 = vmul.f32 %v1040, 0.6931472
      %v1042 = vlog2.pop %v1011
      %v1043 = vmul.f32 %v1042, 0.6931472
      %v1044 = vlog2.pop %v1013
      %v1045 = vmul.f32 %v1044, 0.6931472
      %v1046 = vlog2.pop %v1015
      %v1047 = vmul.f32 %v1046, 0.6931472
      %v1048 = vlog2.pop %v1017
      %v1049 = vmul.f32 %v1048, 0.6931472
      %v1050 = vlog2.pop %v1019
      %v1051 = vmul.f32 %v1050, 0.6931472
      %v1052 = vlog2.pop %v1021
      %v1053 = vmul.f32 %v1052, 0.6931472
      %v1054 = vlog2.pop %v1023
      %v1055 = vmul.f32 %v1054, 0.6931472
      %v1056 = vlog2.pop %v1025
      %v1057 = vmul.f32 %v1056, 0.6931472
      %v1058 = vlog2.pop %v1027
      %v1059 = vmul.f32 %v1058, 0.6931472
      %v1060 = vlog2.pop %v1029
      %v1061 = vmul.f32 %v1060, 0.6931472
      %v1062 = vlog2.pop %v1031
      %v1063 = vmul.f32 %v1062, 0.6931472
      %v1064 = vlog2.pop %v1033
      %v1065 = vmul.f32 %v1064, 0.6931472
      %v1066 = vlog2.pop %v1035
      %v1067 = vmul.f32 %v1066, 0.6931472
      %v1068 = vlog2.pop %v1037
      %v1069 = vmul.f32 %v1068, 0.6931472
      %v1070 = vlog2.pop %v1039
      %v1071 = vmul.f32 %v1070, 0.6931472
      %v1072 = vsub.f32 %v960, %v1041
      %v1073 = vsub.f32 %v961, %v1043
      %v1074 = vsub.f32 %v962, %v1045
      %v1075 = vsub.f32 %v963, %v1047
      %v1076 = vsub.f32 %v964, %v1049
      %v1077 = vsub.f32 %v965, %v1051
      %v1078 = vsub.f32 %v966, %v1053
      %v1079 = vsub.f32 %v967, %v1055
      %v1080 = vsub.f32 %v968, %v1057
      %v1081 = vsub.f32 %v969, %v1059
      %v1082 = vsub.f32 %v970, %v1061
      %v1083 = vsub.f32 %v971, %v1063
      %v1084 = vsub.f32 %v972, %v1065
      %v1085 = vsub.f32 %v973, %v1067
      %v1086 = vsub.f32 %v974, %v1069
      %v1087 = vsub.f32 %v975, %v1071
      %v1088 = vrcp.pop %v1009
      %v1089 = vrcp.pop %v1011
      %v1090 = vrcp.pop %v1013
      %v1091 = vrcp.pop %v1015
      %v1092 = vrcp.pop %v1017
      %v1093 = vrcp.pop %v1019
      %v1094 = vrcp.pop %v1021
      %v1095 = vrcp.pop %v1023
      %v1096 = vrcp.pop %v1025
      %v1097 = vrcp.pop %v1027
      %v1098 = vrcp.pop %v1029
      %v1099 = vrcp.pop %v1031
      %v1100 = vrcp.pop %v1033
      %v1101 = vrcp.pop %v1035
      %v1102 = vrcp.pop %v1037
      %v1103 = vrcp.pop %v1039
      %v1104 = vmul.f32 %v977, %v1088
      %v1105 = vmul.f32 %v979, %v1089
      %v1106 = vmul.f32 %v981, %v1090
      %v1107 = vmul.f32 %v983, %v1091
      %v1108 = vmul.f32 %v985, %v1092
      %v1109 = vmul.f32 %v987, %v1093
      %v1110 = vmul.f32 %v989, %v1094
      %v1111 = vmul.f32 %v991, %v1095
      %v1112 = vmul.f32 %v993, %v1096
      %v1113 = vmul.f32 %v995, %v1097
      %v1114 = vmul.f32 %v997, %v1098
      %v1115 = vmul.f32 %v999, %v1099
      %v1116 = vmul.f32 %v1001, %v1100
      %v1117 = vmul.f32 %v1003, %v1101
      %v1118 = vmul.f32 %v1005, %v1102
      %v1119 = vmul.f32 %v1007, %v1103
      %v1120 = vld [vmem:[%s323] sm:$0xff]
      %v1121 = vld [vmem:[%s323 + $0x8] sm:$0xff]
      %v1122 = vld [vmem:[%s323 + $0x10] sm:$0xff]
      %v1123 = vld [vmem:[%s323 + $0x18] sm:$0xff]
      %v1124 = vld [vmem:[%s323 + $0x20] sm:$0xff]
      %v1125 = vld [vmem:[%s323 + $0x28] sm:$0xff]
      %v1126 = vld [vmem:[%s323 + $0x30] sm:$0xff]
      %v1127 = vld [vmem:[%s323 + $0x38] sm:$0xff]
      %v1128 = vld [vmem:[%s323 + $0x40] sm:$0xff]
      %v1129 = vld [vmem:[%s323 + $0x48] sm:$0xff]
      %v1130 = vld [vmem:[%s323 + $0x50] sm:$0xff]
      %v1131 = vld [vmem:[%s323 + $0x58] sm:$0xff]
      %v1132 = vld [vmem:[%s323 + $0x60] sm:$0xff]
      %v1133 = vld [vmem:[%s323 + $0x68] sm:$0xff]
      %v1134 = vld [vmem:[%s323 + $0x70] sm:$0xff]
      %v1135 = vld [vmem:[%s323 + $0x78] sm:$0xff]
      %1136 = vset.pattern.permute.xlu0 0
      %1137 = vperm.xlu0 %1136, %v1120
      %v1138 = vpop.permute.xlu0 %1137
      %1139 = vset.pattern.permute.xlu0 0
      %1140 = vperm.xlu0 %1139, %v1121
      %v1141 = vpop.permute.xlu0 %1140
      %1142 = vset.pattern.permute.xlu0 0
      %1143 = vperm.xlu0 %1142, %v1122
      %v1144 = vpop.permute.xlu0 %1143
      %1145 = vset.pattern.permute.xlu0 0
      %1146 = vperm.xlu0 %1145, %v1123
      %v1147 = vpop.permute.xlu0 %1146
      %1148 = vset.pattern.permute.xlu0 0
      %1149 = vperm.xlu0 %1148, %v1124
      %v1150 = vpop.permute.xlu0 %1149
      %1151 = vset.pattern.permute.xlu0 0
      %1152 = vperm.xlu0 %1151, %v1125
      %v1153 = vpop.permute.xlu0 %1152
      %1154 = vset.pattern.permute.xlu0 0
      %1155 = vperm.xlu0 %1154, %v1126
      %v1156 = vpop.permute.xlu0 %1155
      %1157 = vset.pattern.permute.xlu0 0
      %1158 = vperm.xlu0 %1157, %v1127
      %v1159 = vpop.permute.xlu0 %1158
      %1160 = vset.pattern.permute.xlu0 0
      %1161 = vperm.xlu0 %1160, %v1128
      %v1162 = vpop.permute.xlu0 %1161
      %1163 = vset.pattern.permute.xlu0 0
      %1164 = vperm.xlu0 %1163, %v1129
      %v1165 = vpop.permute.xlu0 %1164
      %1166 = vset.pattern.permute.xlu0 0
      %1167 = vperm.xlu0 %1166, %v1130
      %v1168 = vpop.permute.xlu0 %1167
      %1169 = vset.pattern.permute.xlu0 0
      %1170 = vperm.xlu0 %1169, %v1131
      %v1171 = vpop.permute.xlu0 %1170
      %1172 = vset.pattern.permute.xlu0 0
      %1173 = vperm.xlu0 %1172, %v1132
      %v1174 = vpop.permute.xlu0 %1173
      %1175 = vset.pattern.permute.xlu0 0
      %1176 = vperm.xlu0 %1175, %v1133
      %v1177 = vpop.permute.xlu0 %1176
      %1178 = vset.pattern.permute.xlu0 0
      %1179 = vperm.xlu0 %1178, %v1134
      %v1180 = vpop.permute.xlu0 %1179
      %1181 = vset.pattern.permute.xlu0 0
      %1182 = vperm.xlu0 %1181, %v1135
      %v1183 = vpop.permute.xlu0 %1182
      %vm1184 = vcmp.eq.s32.totalorder %v910, %v1138
      %vm1185 = vcmp.eq.s32.totalorder %v910, %v1141
      %vm1186 = vcmp.eq.s32.totalorder %v910, %v1144
      %vm1187 = vcmp.eq.s32.totalorder %v910, %v1147
      %vm1188 = vcmp.eq.s32.totalorder %v910, %v1150
      %vm1189 = vcmp.eq.s32.totalorder %v910, %v1153
      %vm1190 = vcmp.eq.s32.totalorder %v910, %v1156
      %vm1191 = vcmp.eq.s32.totalorder %v910, %v1159
      %vm1192 = vcmp.eq.s32.totalorder %v910, %v1162
      %vm1193 = vcmp.eq.s32.totalorder %v910, %v1165
      %vm1194 = vcmp.eq.s32.totalorder %v910, %v1168
      %vm1195 = vcmp.eq.s32.totalorder %v910, %v1171
      %vm1196 = vcmp.eq.s32.totalorder %v910, %v1174
      %vm1197 = vcmp.eq.s32.totalorder %v910, %v1177
      %vm1198 = vcmp.eq.s32.totalorder %v910, %v1180
      %vm1199 = vcmp.eq.s32.totalorder %v910, %v1183
      %v1200 = vsel %vm1184, 1, 0
      %v1201 = vsel %vm1185, 1, 0
      %v1202 = vsel %vm1186, 1, 0
      %v1203 = vsel %vm1187, 1, 0
      %v1204 = vsel %vm1188, 1, 0
      %v1205 = vsel %vm1189, 1, 0
      %v1206 = vsel %vm1190, 1, 0
      %v1207 = vsel %vm1191, 1, 0
      %v1208 = vsel %vm1192, 1, 0
      %v1209 = vsel %vm1193, 1, 0
      %v1210 = vsel %vm1194, 1, 0
      %v1211 = vsel %vm1195, 1, 0
      %v1212 = vsel %vm1196, 1, 0
      %v1213 = vsel %vm1197, 1, 0
      %v1214 = vsel %vm1198, 1, 0
      %v1215 = vsel %vm1199, 1, 0
      %v1216 = vcvt.s32.f32 %v1200
      %v1217 = vcvt.s32.f32 %v1201
      %v1218 = vcvt.s32.f32 %v1202
      %v1219 = vcvt.s32.f32 %v1203
      %v1220 = vcvt.s32.f32 %v1204
      %v1221 = vcvt.s32.f32 %v1205
      %v1222 = vcvt.s32.f32 %v1206
      %v1223 = vcvt.s32.f32 %v1207
      %v1224 = vcvt.s32.f32 %v1208
      %v1225 = vcvt.s32.f32 %v1209
      %v1226 = vcvt.s32.f32 %v1210
      %v1227 = vcvt.s32.f32 %v1211
      %v1228 = vcvt.s32.f32 %v1212
      %v1229 = vcvt.s32.f32 %v1213
      %v1230 = vcvt.s32.f32 %v1214
      %v1231 = vcvt.s32.f32 %v1215
      %v1232 = vmul.f32 %v1072, %v1216
      %v1233 = vmul.f32 %v1073, %v1217
      %v1234 = vmul.f32 %v1074, %v1218
      %v1235 = vmul.f32 %v1075, %v1219
      %v1236 = vmul.f32 %v1076, %v1220
      %v1237 = vmul.f32 %v1077, %v1221
      %v1238 = vmul.f32 %v1078, %v1222
      %v1239 = vmul.f32 %v1079, %v1223
      %v1240 = vmul.f32 %v1080, %v1224
      %v1241 = vmul.f32 %v1081, %v1225
      %v1242 = vmul.f32 %v1082, %v1226
      %v1243 = vmul.f32 %v1083, %v1227
      %v1244 = vmul.f32 %v1084, %v1228
      %v1245 = vmul.f32 %v1085, %v1229
      %v1246 = vmul.f32 %v1086, %v1230
      %v1247 = vmul.f32 %v1087, %v1231
      %1248 = vadd.xlane.f32.xlu0 %v1232
      %v1249 = vpop.xlane.xlu0 %1248
      %1250 = vadd.xlane.f32.xlu0 %v1233
      %v1251 = vpop.xlane.xlu0 %1250
      %1252 = vadd.xlane.f32.xlu0 %v1234
      %v1253 = vpop.xlane.xlu0 %1252
      %1254 = vadd.xlane.f32.xlu0 %v1235
      %v1255 = vpop.xlane.xlu0 %1254
      %1256 = vadd.xlane.f32.xlu0 %v1236
      %v1257 = vpop.xlane.xlu0 %1256
      %1258 = vadd.xlane.f32.xlu0 %v1237
      %v1259 = vpop.xlane.xlu0 %1258
      %1260 = vadd.xlane.f32.xlu0 %v1238
      %v1261 = vpop.xlane.xlu0 %1260
      %1262 = vadd.xlane.f32.xlu0 %v1239
      %v1263 = vpop.xlane.xlu0 %1262
      %1264 = vadd.xlane.f32.xlu0 %v1240
      %v1265 = vpop.xlane.xlu0 %1264
      %1266 = vadd.xlane.f32.xlu0 %v1241
      %v1267 = vpop.xlane.xlu0 %1266
      %1268 = vadd.xlane.f32.xlu0 %v1242
      %v1269 = vpop.xlane.xlu0 %1268
      %1270 = vadd.xlane.f32.xlu0 %v1243
      %v1271 = vpop.xlane.xlu0 %1270
      %1272 = vadd.xlane.f32.xlu0 %v1244
      %v1273 = vpop.xlane.xlu0 %1272
      %1274 = vadd.xlane.f32.xlu0 %v1245
      %v1275 = vpop.xlane.xlu0 %1274
      %1276 = vadd.xlane.f32.xlu0 %v1246
      %v1277 = vpop.xlane.xlu0 %1276
      %1278 = vadd.xlane.f32.xlu0 %v1247
      %v1279 = vpop.xlane.xlu0 %1278
      %v1280 = vmul.f32 %v1104, %v1072
      %v1281 = vmul.f32 %v1105, %v1073
      %v1282 = vmul.f32 %v1106, %v1074
      %v1283 = vmul.f32 %v1107, %v1075
      %v1284 = vmul.f32 %v1108, %v1076
      %v1285 = vmul.f32 %v1109, %v1077
      %v1286 = vmul.f32 %v1110, %v1078
      %v1287 = vmul.f32 %v1111, %v1079
      %v1288 = vmul.f32 %v1112, %v1080
      %v1289 = vmul.f32 %v1113, %v1081
      %v1290 = vmul.f32 %v1114, %v1082
      %v1291 = vmul.f32 %v1115, %v1083
      %v1292 = vmul.f32 %v1116, %v1084
      %v1293 = vmul.f32 %v1117, %v1085
      %v1294 = vmul.f32 %v1118, %v1086
      %v1295 = vmul.f32 %v1119, %v1087
      %1296 = vadd.xlane.f32.xlu0 %v1280
      %v1297 = vpop.xlane.xlu0 %1296
      %1298 = vadd.xlane.f32.xlu0 %v1281
      %v1299 = vpop.xlane.xlu0 %1298
      %1300 = vadd.xlane.f32.xlu0 %v1282
      %v1301 = vpop.xlane.xlu0 %1300
      %1302 = vadd.xlane.f32.xlu0 %v1283
      %v1303 = vpop.xlane.xlu0 %1302
      %1304 = vadd.xlane.f32.xlu0 %v1284
      %v1305 = vpop.xlane.xlu0 %1304
      %1306 = vadd.xlane.f32.xlu0 %v1285
      %v1307 = vpop.xlane.xlu0 %1306
      %1308 = vadd.xlane.f32.xlu0 %v1286
      %v1309 = vpop.xlane.xlu0 %1308
      %1310 = vadd.xlane.f32.xlu0 %v1287
      %v1311 = vpop.xlane.xlu0 %1310
      %1312 = vadd.xlane.f32.xlu0 %v1288
      %v1313 = vpop.xlane.xlu0 %1312
      %1314 = vadd.xlane.f32.xlu0 %v1289
      %v1315 = vpop.xlane.xlu0 %1314
      %1316 = vadd.xlane.f32.xlu0 %v1290
      %v1317 = vpop.xlane.xlu0 %1316
      %1318 = vadd.xlane.f32.xlu0 %v1291
      %v1319 = vpop.xlane.xlu0 %1318
      %1320 = vadd.xlane.f32.xlu0 %v1292
      %v1321 = vpop.xlane.xlu0 %1320
      %1322 = vadd.xlane.f32.xlu0 %v1293
      %v1323 = vpop.xlane.xlu0 %1322
      %1324 = vadd.xlane.f32.xlu0 %v1294
      %v1325 = vpop.xlane.xlu0 %1324
      %1326 = vadd.xlane.f32.xlu0 %v1295
      %v1327 = vpop.xlane.xlu0 %1326
      %v1328 = vsub.f32 0.0, %v1297
      %v1329 = vsub.f32 0.0, %v1299
      %v1330 = vsub.f32 0.0, %v1301
      %v1331 = vsub.f32 0.0, %v1303
      %v1332 = vsub.f32 0.0, %v1305
      %v1333 = vsub.f32 0.0, %v1307
      %v1334 = vsub.f32 0.0, %v1309
      %v1335 = vsub.f32 0.0, %v1311
      %v1336 = vsub.f32 0.0, %v1313
      %v1337 = vsub.f32 0.0, %v1315
      %v1338 = vsub.f32 0.0, %v1317
      %v1339 = vsub.f32 0.0, %v1319
      %v1340 = vsub.f32 0.0, %v1321
      %v1341 = vsub.f32 0.0, %v1323
      %v1342 = vsub.f32 0.0, %v1325
      %v1343 = vsub.f32 0.0, %v1327
      %vm1344 = vcmp.eq.s32.totalorder %v910, 8
      %v1345 = vsel %vm1344, %v847, 0.0
      %v1346 = vsel %vm1344, %v850, 0.0
      %v1347 = vsel %vm1344, %v855, 0.0
      %v1348 = vsel %vm1344, %v858, 0.0
      %v1349 = vsel %vm1344, %v863, 0.0
      %v1350 = vsel %vm1344, %v866, 0.0
      %v1351 = vsel %vm1344, %v871, 0.0
      %v1352 = vsel %vm1344, %v874, 0.0
      %v1353 = vsel %vm1344, %v879, 0.0
      %v1354 = vsel %vm1344, %v882, 0.0
      %v1355 = vsel %vm1344, %v887, 0.0
      %v1356 = vsel %vm1344, %v890, 0.0
      %v1357 = vsel %vm1344, %v895, 0.0
      %v1358 = vsel %vm1344, %v898, 0.0
      %v1359 = vsel %vm1344, %v903, 0.0
      %v1360 = vsel %vm1344, %v906, 0.0
      %1361 = vadd.xlane.f32.xlu0 %v1345
      %v1362 = vpop.xlane.xlu0 %1361
      %1363 = vadd.xlane.f32.xlu0 %v1346
      %v1364 = vpop.xlane.xlu0 %1363
      %1365 = vadd.xlane.f32.xlu0 %v1347
      %v1366 = vpop.xlane.xlu0 %1365
      %1367 = vadd.xlane.f32.xlu0 %v1348
      %v1368 = vpop.xlane.xlu0 %1367
      %1369 = vadd.xlane.f32.xlu0 %v1349
      %v1370 = vpop.xlane.xlu0 %1369
      %1371 = vadd.xlane.f32.xlu0 %v1350
      %v1372 = vpop.xlane.xlu0 %1371
      %1373 = vadd.xlane.f32.xlu0 %v1351
      %v1374 = vpop.xlane.xlu0 %1373
      %1375 = vadd.xlane.f32.xlu0 %v1352
      %v1376 = vpop.xlane.xlu0 %1375
      %1377 = vadd.xlane.f32.xlu0 %v1353
      %v1378 = vpop.xlane.xlu0 %1377
      %1379 = vadd.xlane.f32.xlu0 %v1354
      %v1380 = vpop.xlane.xlu0 %1379
      %1381 = vadd.xlane.f32.xlu0 %v1355
      %v1382 = vpop.xlane.xlu0 %1381
      %1383 = vadd.xlane.f32.xlu0 %v1356
      %v1384 = vpop.xlane.xlu0 %1383
      %1385 = vadd.xlane.f32.xlu0 %v1357
      %v1386 = vpop.xlane.xlu0 %1385
      %1387 = vadd.xlane.f32.xlu0 %v1358
      %v1388 = vpop.xlane.xlu0 %1387
      %1389 = vadd.xlane.f32.xlu0 %v1359
      %v1390 = vpop.xlane.xlu0 %1389
      %1391 = vadd.xlane.f32.xlu0 %v1360
      %v1392 = vpop.xlane.xlu0 %1391
      %vm1393 = vcmp.eq.s32.totalorder %v910, 0
      %vm1394 = vcmp.eq.s32.totalorder %v910, 1
      %vm1395 = vcmp.eq.s32.totalorder %v910, 2
      %v1396 = vsel %vm1395, %v1362, 0.0
      %v1397 = vsel %vm1395, %v1364, 0.0
      %v1398 = vsel %vm1395, %v1366, 0.0
      %v1399 = vsel %vm1395, %v1368, 0.0
      %v1400 = vsel %vm1395, %v1370, 0.0
      %v1401 = vsel %vm1395, %v1372, 0.0
      %v1402 = vsel %vm1395, %v1374, 0.0
      %v1403 = vsel %vm1395, %v1376, 0.0
      %v1404 = vsel %vm1395, %v1378, 0.0
      %v1405 = vsel %vm1395, %v1380, 0.0
      %v1406 = vsel %vm1395, %v1382, 0.0
      %v1407 = vsel %vm1395, %v1384, 0.0
      %v1408 = vsel %vm1395, %v1386, 0.0
      %v1409 = vsel %vm1395, %v1388, 0.0
      %v1410 = vsel %vm1395, %v1390, 0.0
      %v1411 = vsel %vm1395, %v1392, 0.0
      %v1412 = vsel %vm1394, %v1328, %v1396
      %v1413 = vsel %vm1394, %v1329, %v1397
      %v1414 = vsel %vm1394, %v1330, %v1398
      %v1415 = vsel %vm1394, %v1331, %v1399
      %v1416 = vsel %vm1394, %v1332, %v1400
      %v1417 = vsel %vm1394, %v1333, %v1401
      %v1418 = vsel %vm1394, %v1334, %v1402
      %v1419 = vsel %vm1394, %v1335, %v1403
      %v1420 = vsel %vm1394, %v1336, %v1404
      %v1421 = vsel %vm1394, %v1337, %v1405
      %v1422 = vsel %vm1394, %v1338, %v1406
      %v1423 = vsel %vm1394, %v1339, %v1407
      %v1424 = vsel %vm1394, %v1340, %v1408
      %v1425 = vsel %vm1394, %v1341, %v1409
      %v1426 = vsel %vm1394, %v1342, %v1410
      %v1427 = vsel %vm1394, %v1343, %v1411
      %v1428 = vsel %vm1393, %v1249, %v1412
      %v1429 = vsel %vm1393, %v1251, %v1413
      %v1430 = vsel %vm1393, %v1253, %v1414
      %v1431 = vsel %vm1393, %v1255, %v1415
      %v1432 = vsel %vm1393, %v1257, %v1416
      %v1433 = vsel %vm1393, %v1259, %v1417
      %v1434 = vsel %vm1393, %v1261, %v1418
      %v1435 = vsel %vm1393, %v1263, %v1419
      %v1436 = vsel %vm1393, %v1265, %v1420
      %v1437 = vsel %vm1393, %v1267, %v1421
      %v1438 = vsel %vm1393, %v1269, %v1422
      %v1439 = vsel %vm1393, %v1271, %v1423
      %v1440 = vsel %vm1393, %v1273, %v1424
      %v1441 = vsel %vm1393, %v1275, %v1425
      %v1442 = vsel %vm1393, %v1277, %v1426
      %v1443 = vsel %vm1393, %v1279, %v1427
      %1444 = vst [vmem:[%s329] sm:$0xff] %v1428
      %1445 = vst [vmem:[%s329 + $0x8] sm:$0xff] %v1429
      %1446 = vst [vmem:[%s329 + $0x10] sm:$0xff] %v1430
      %1447 = vst [vmem:[%s329 + $0x18] sm:$0xff] %v1431
      %1448 = vst [vmem:[%s329 + $0x20] sm:$0xff] %v1432
      %1449 = vst [vmem:[%s329 + $0x28] sm:$0xff] %v1433
      %1450 = vst [vmem:[%s329 + $0x30] sm:$0xff] %v1434
      %1451 = vst [vmem:[%s329 + $0x38] sm:$0xff] %v1435
      %1452 = vst [vmem:[%s329 + $0x40] sm:$0xff] %v1436
      %1453 = vst [vmem:[%s329 + $0x48] sm:$0xff] %v1437
      %1454 = vst [vmem:[%s329 + $0x50] sm:$0xff] %v1438
      %1455 = vst [vmem:[%s329 + $0x58] sm:$0xff] %v1439
      %1456 = vst [vmem:[%s329 + $0x60] sm:$0xff] %v1440
      %1457 = vst [vmem:[%s329 + $0x68] sm:$0xff] %v1441
      %1458 = vst [vmem:[%s329 + $0x70] sm:$0xff] %v1442
      %1459 = vst [vmem:[%s329 + $0x78] sm:$0xff] %v1443
      %s1460 = smul.u32 16, %s19
      %p1461 = scmp.lt.s32.totalorder %s1460, 31
      %s1462 = scalar_select %p1461, %s1460, 31
      %s1463 = smul.addr %s1462, 8
      %s1464 = scalar_lea.vmem %s8, %s1463
      // Predicated region
      $region53: #{actor_critic_evaluate.1} parent=51 // pred_check
        %p1465 = pneg %p215
      $region54: #{actor_critic_evaluate.1} parent=51 // pred_check_branch
        %1467 = sbr.rel (%p1465) target = $region56
      $region55: #{actor_critic_evaluate.1} parent=51 // pred_region
        %s1468 = smul.u32 16, %s19
      $region56: #{actor_critic_evaluate.1} parent=51 // pred_fallthru
        _
    $region52: #{actor_critic_evaluate.1} parent=5 // pred_fallthru
      _
    %p1469 = scmp.le.s32.totalorder 2, %s14
    // Predicated region
    $region57: #{actor_critic_evaluate.1} parent=5 // pred_check
      %p1470 = pneg %p1469
    $region58: #{actor_critic_evaluate.1} parent=5 // pred_check_branch
      %1472 = sbr.rel (%p1470) target = $region60
    $region59: #{actor_critic_evaluate.1} parent=5 // pred_region
      %s1473 = ssub.s32 %s14, 2
      // Predicated region
      $region61: #{actor_critic_evaluate.1} parent=59 // pred_check
        %p1474 = pneg %p221
      $region62: #{actor_critic_evaluate.1} parent=59 // pred_check_branch
        %1476 = sbr.rel (%p1474) target = $region64
      $region63: #{actor_critic_evaluate.1} parent=59 // pred_region
        %s1477 = smul.u32 16, %s20
        %p1478 = scmp.lt.s32.totalorder %s1477, 31
        %s1479 = scalar_select %p1478, %s1477, 31
        %s1480 = smul.addr %s1479, 8
        %s1481 = scalar_lea.vmem %s8, %s1480
      $region64: #{actor_critic_evaluate.1} parent=59 // pred_fallthru
        _
    $region60: #{actor_critic_evaluate.1} parent=5 // pred_fallthru
      _
  $region6: #{actor_critic_evaluate.1} parent=0 // loop_footer
    %s18 = sadd.s32 1, %s14
  $region7: #{actor_critic_evaluate.1} parent=0 // loop_footer_branch
    %13 = sbr.rel target = $region3
  $region8: #{actor_critic_evaluate.1} parent=0 // loop_exit
    _

</llo_original>
